<compile_context>
chip_gen: v6e
topology: v6e:2x2x1
jax: 0.10.0
libtpu: 0.0.40
codegen_flags: <defaults>
</compile_context>

<pallas_src>
import jax
import jax.numpy as jnp
import numpy as np
from jax.experimental import pallas as pl
from jax.experimental.pallas import tpu as pltpu


# ----------------------------- slab packing helpers -----------------------------

def _ceil_to(x, m):
    return ((x + m - 1) // m) * m


def pack_slab(entries, ncols, dtype, row_align):
    """Pack a list of (name, 2-D array) into one slab.  Each entry starts at a
    row offset aligned to `row_align` so in-kernel carves are sublane-tile
    aligned.  Returns (slab, {name: (row_offset, rows, cols)})."""
    layout = {}
    off = 0
    for name, a in entries:
        r, c = a.shape
        assert c <= ncols, f"{name}: {c} > {ncols}"
        layout[name] = (off, r, c)
        off += _ceil_to(r, row_align)
    slab = jnp.zeros((max(_ceil_to(off, row_align), row_align), ncols), dtype)
    for name, a in entries:
        o, r, c = layout[name]
        slab = slab.at[o:o + r, :c].set(a.astype(dtype))
    return slab, layout


# ----------------------------- fused Pallas kernel -----------------------------

def make_kernel(wl, bl, dims):
    """Build the fused kernel, closing over the static slab layouts and sizes."""
    H, T, B = dims['H'], dims['T'], dims['B']
    f32, bf16 = jnp.float32, jnp.bfloat16

    def kernel(a_norm_ref, pooladj_ref, x_ref, seq_ref, w_ref, b_ref, out_ref):
        def W(name):                       # static carve from the bf16 weight slab
            o, r, c = wl[name]
            return w_ref[o:o + r, 0:c]

        def Bv(name):                      # static carve from the f32 bias slab
            o, r, c = bl[name]
            return b_ref[o:o + 1, 0:c]

        def mm(a, bm):                     # bf16 MXU operands, f32 accumulation
            return jnp.dot(a.astype(bf16), bm.astype(bf16),
                           preferred_element_type=f32)

        # ---------------- GCN branch ----------------
        a_norm = a_norm_ref[...]
        h1 = jnp.maximum(mm(a_norm, mm(x_ref[...], W('gw1'))) + Bv('gb1'), 0.0)
        h2 = jnp.maximum(mm(a_norm, mm(h1, W('gw2'))) + Bv('gb2'), 0.0)
        # emb = mean_pool(fc(adj_hat @ h2)); pool@adj_hat precomputed, bias folds
        # through exactly because mean-pool rows sum to 1.
        emb = mm(mm(pooladj_ref[...], h2), W('gwfc')) + Bv('gbfc')          # (B, Dg)

        # ---------------- BiLSTM branch ----------------
        # Hoisted fwd+bwd input projection: one (T*B, I) x (I, 8H) matmul.
        # Columns [0:4H) = forward gates, [4H:8H) = backward gates (PyTorch i,f,g,o).
        xw = mm(seq_ref[...], W('wih_fb')) + Bv('b_fb')                     # (T*B, 8H) f32
        whh = W('whh_f')                                                    # (H, 4H) bf16

        def cell(gates, c):
            # One full-vreg sigmoid + one full-vreg tanh over all packed gates.
            sg = jax.nn.sigmoid(gates)                                      # (B, 4H)
            tg = jnp.tanh(gates)
            c_new = sg[:, H:2 * H] * c + sg[:, 0:H] * tg[:, 2 * H:3 * H]    # f*c + i*g
            h_new = sg[:, 3 * H:4 * H] * jnp.tanh(c_new)                    # o*tanh(c)
            return h_new, c_new

        h = jnp.zeros((B, H), f32)
        c = jnp.zeros((B, H), f32)
        for t in range(T):                 # static unroll; T is a compile-time const
            gates = xw[t * B:(t + 1) * B, 0:4 * H] + mm(h, whh)
            h, c = cell(gates, c)
        h_fwd = h

        # Reverse direction: the model only reads bilstm_out[:, -1]; for the
        # reverse LSTM that is one step on x[T-1] from the zero state, so the
        # W_hh_bwd recurrence vanishes entirely.
        h_bwd, _ = cell(xw[(T - 1) * B:T * B, 4 * H:8 * H], jnp.zeros((B, H), f32))

        # Dropout(0.1) is identity at inference.
        # Linear(2H -> out_size) on concat([h_fwd, h_bwd]) as a split matmul.
        pred = mm(h_fwd, W('wlin_f')) + mm(h_bwd, W('wlin_b')) + Bv('blin')  # (B, out)

        # ---------- head: Linear(Dg+out -> 128) -> ReLU -> Linear(128 -> final) ----------
        # concat([emb, pred]) folded into a split matmul (hw1_g | hw1_p).
        hh = jnp.maximum(mm(emb, W('hw1_g')) + mm(pred, W('hw1_p')) + Bv('hb1'), 0.0)
        out_ref[...] = (mm(hh, W('hw2')) + Bv('hb2')).astype(out_ref.dtype)

    return kernel


# ----------------------------- wrapper -----------------------------

def make_forward(wl, bl, dims):
    kernel = make_kernel(wl, bl, dims)
    vmem = pl.BlockSpec(memory_space=pltpu.MemorySpace.VMEM)
    B, final_dim = dims['B'], dims['final_dim']

    @jax.jit
    def fwd(a_norm, pool_adj, x, seq, wslab, bslab):
        # seq arrives batch-first (B, T, I) like the PyTorch module; make it
        # time-major (T*B, I) so each recurrence step is a contiguous row slice.
        Bs, T, I = seq.shape
        seq_tm = jnp.transpose(seq, (1, 0, 2)).reshape(T * Bs, I)
        return pl.pallas_call(
            kernel,
            out_shape=jax.ShapeDtypeStruct((B, final_dim), jnp.float32),
            in_specs=[vmem] * 6,
            out_specs=vmem,
        )(a_norm, pool_adj, x, seq_tm, wslab, bslab)

    return fwd


# ----------------------------- one-time weight packing -----------------------------

def prepare_weights(p):
    """Pack all params into one bf16 weight slab and one f32 bias slab (compact
    gate layout, 4H = 128 lanes per direction).  Done once at load time."""
    H = p['whh_f'].shape[0]
    Dg = p['gcn_wfc'].shape[1]
    assert 4 * H == 128, "compact gate layout assumes 4*hidden == 128 lanes"

    wih_fb = jnp.concatenate([p['wih_f'], p['wih_b']], axis=1)   # (I, 8H)
    b_fb = jnp.concatenate([p['b_f'], p['b_b']], axis=1)         # (1, 8H)

    w_entries = [
        ('gw1', p['gcn_w1']), ('gw2', p['gcn_w2']), ('gwfc', p['gcn_wfc']),
        ('wih_fb', wih_fb), ('whh_f', p['whh_f']),
        ('wlin_f', p['wlin'][:H]), ('wlin_b', p['wlin'][H:]),
        ('hw1_g', p['head_w1'][:Dg]), ('hw1_p', p['head_w1'][Dg:]),
        ('hw2', p['head_w2']),
    ]
    b_entries = [
        ('gb1', p['gcn_b1']), ('gb2', p['gcn_b2']), ('gbfc', p['gcn_bfc']),
        ('b_fb', b_fb), ('blin', p['blin']),
        ('hb1', p['head_b1']), ('hb2', p['head_b2']),
    ]
    wslab, wl = pack_slab(w_entries, 256, jnp.bfloat16, row_align=16)
    bslab, bl = pack_slab(b_entries, 256, jnp.float32, row_align=8)
    return wslab, bslab, wl, bl


def build_graph_matrices(edge_index, batch, num_nodes, num_graphs):
    """Dense GCNConv normalization, set_graph_matrices normalization, the
    global_mean_pool matrix, and the fused pool@adj_hat (one-time per graph)."""
    # TODO(synk): at large N the edge_index scatter should stay sparse; here the
    # dense normalized adjacency is a one-time host-side preprocessing step.
    A = jnp.zeros((num_nodes, num_nodes), jnp.float32).at[edge_index[0], edge_index[1]].set(1.0)
    A_hat = A + jnp.eye(num_nodes, dtype=jnp.float32)
    deg_hat = A_hat.sum(axis=1)
    dinv = jnp.where(deg_hat > 0, 1.0 / jnp.sqrt(jnp.maximum(deg_hat, 1e-12)), 0.0)
    a_norm = dinv[:, None] * A_hat * dinv[None, :]          # GCNConv: D̂^-1/2 (A+I) D̂^-1/2
    deg = A.sum(axis=1)
    dinv2 = jnp.where(deg > 0, 1.0 / jnp.sqrt(jnp.maximum(deg, 1e-12)), 0.0)
    adj_hat = dinv2[:, None] * A * dinv2[None, :]           # set_graph_matrices: D^-1/2 A D^-1/2
    counts = jnp.bincount(batch, length=num_graphs).astype(jnp.float32)
    inv_counts = jnp.where(counts > 0, 1.0 / counts, 0.0)
    pool = jax.nn.one_hot(batch, num_graphs, dtype=jnp.float32).T * inv_counts[:, None]
    pool_adj = pool @ adj_hat                                # (B, N) fused mean-pool∘adj
    return a_norm, adj_hat, pool, pool_adj


# ----------------------------- plain-JAX f32 reference -----------------------------

def reference_forward(a_norm, adj_hat, pool, x, seq, p):
    h1 = jax.nn.relu(a_norm @ (x @ p['gcn_w1']) + p['gcn_b1'])
    h2 = jax.nn.relu(a_norm @ (h1 @ p['gcn_w2']) + p['gcn_b2'])
    g = (adj_hat @ h2) @ p['gcn_wfc'] + p['gcn_bfc']
    emb = pool @ g

    B, T, _ = seq.shape
    H = p['whh_f'].shape[0]

    def cell(carry, x_t, wih, whh, b):
        h, c = carry
        gates = x_t @ wih + h @ whh + b
        i, f, gg, o = jnp.split(gates, 4, axis=1)
        c = jax.nn.sigmoid(f) * c + jax.nn.sigmoid(i) * jnp.tanh(gg)
        h = jax.nn.sigmoid(o) * jnp.tanh(c)
        return (h, c), h

    h0 = jnp.zeros((B, H), jnp.float32)
    c0 = jnp.zeros((B, H), jnp.float32)

    carry = (h0, c0)
    h_fwd = h0
    for t in range(T):
        carry, h_fwd = cell(carry, seq[:, t, :], p['wih_f'], p['whh_f'], p['b_f'])

    # full reverse scan; bilstm_out[:, -1] for the reverse direction is the
    # output produced at original time index T-1 (the first reverse step).
    carry = (h0, c0)
    bwd_outs = [None] * T
    for t in range(T - 1, -1, -1):
        carry, h = cell(carry, seq[:, t, :], p['wih_b'], p['whh_b'], p['b_b'])
        bwd_outs[t] = h

    last = jnp.concatenate([h_fwd, bwd_outs[T - 1]], axis=1)
    pred = last @ p['wlin'] + p['blin']

    comb = jnp.concatenate([emb, pred], axis=1)
    hh = jax.nn.relu(comb @ p['head_w1'] + p['head_b1'])
    return hh @ p['head_w2'] + p['head_b2']


# ----------------------------- parameter init -----------------------------

def init_params(key, F, Hg, Dg, I, H, out_size, combined, final_dim):
    ks = jax.random.split(key, 19)

    def w(k, shape):
        return 0.1 * jax.random.normal(k, shape, jnp.float32)

    return dict(
        gcn_w1=w(ks[0], (F, Hg)),  gcn_b1=w(ks[1], (1, Hg)),
        gcn_w2=w(ks[2], (Hg, Hg)), gcn_b2=w(ks[3], (1, Hg)),
        gcn_wfc=w(ks[4], (Hg, Dg)), gcn_bfc=w(ks[5], (1, Dg)),
        wih_f=w(ks[6], (I, 4 * H)), whh_f=w(ks[7], (H, 4 * H)), b_f=w(ks[8], (1, 4 * H)),
        wih_b=w(ks[9], (I, 4 * H)), whh_b=w(ks[10], (H, 4 * H)), b_b=w(ks[11], (1, 4 * H)),
        wlin=w(ks[12], (2 * H, out_size)), blin=w(ks[13], (1, out_size)),
        head_w1=w(ks[14], (combined, 128)), head_b1=w(ks[15], (1, 128)),
        head_w2=w(ks[16], (128, final_dim)), head_b2=w(ks[17], (1, final_dim)),
    )


# ----------------------------- main -----------------------------

if __name__ == "__main__":
    key = jax.random.PRNGKey(0)

    # small shapes consistent with the module
    B = 2                 # graphs per batch / sequence batch
    nodes_per_graph = 8
    N = B * nodes_per_graph
    F = 8                 # num_node_features
    Hg = 16               # gcn_hidden_channels
    Dg = 8                # gcn output_dim
    T = 8                 # sequence length
    I = 8                 # bilstm input_size
    H = 32                # bilstm hidden_layer_size (4H = 128 lanes, compact gates)
    out_size = 1          # bilstm output_size
    combined = Dg + out_size
    final_dim = 4

    k_x, k_seq, k_p = jax.random.split(key, 3)
    x_nodes = jax.random.normal(k_x, (N, F), jnp.float32)
    seq = jax.random.normal(k_seq, (B, T, I), jnp.float32)   # batch_first, as in the module

    # edge_index: ring within each graph, both directions
    src, dst = [], []
    for gidx in range(B):
        base = gidx * nodes_per_graph
        for i in range(nodes_per_graph):
            a = base + i
            b_ = base + (i + 1) % nodes_per_graph
            src += [a, b_]
            dst += [b_, a]
    edge_index = jnp.array([src, dst], dtype=jnp.int32)
    batch = jnp.repeat(jnp.arange(B, dtype=jnp.int32), nodes_per_graph)

    a_norm, adj_hat, pool, pool_adj = build_graph_matrices(edge_index, batch, N, B)
    p = init_params(k_p, F, Hg, Dg, I, H, out_size, combined, final_dim)

    # one-time packing into two slabs (bf16 weights, f32 biases)
    wslab, bslab, wl, bl = prepare_weights(p)
    dims = dict(H=H, T=T, B=B, final_dim=final_dim)
    fwd = make_forward(wl, bl, dims)

    a_norm_bf = a_norm.astype(jnp.bfloat16)
    pool_adj_bf = pool_adj.astype(jnp.bfloat16)

    # --- fused Pallas forward (single launch, 6 input DMAs) ---
    out = fwd(a_norm_bf, pool_adj_bf, x_nodes, seq, wslab, bslab)
    out = jax.block_until_ready(out)

    # sanity check against a plain-JAX f32 reference of the module's math
    # (tolerance relaxed slightly because the kernel uses bf16 MXU operands).
    ref = reference_forward(a_norm, adj_hat, pool, x_nodes, seq, p)
    ref = jax.block_until_ready(ref)
    assert out.shape == (B, final_dim)
    assert np.allclose(np.asarray(out), np.asarray(ref), atol=2e-2, rtol=2e-2), \
        "Pallas output mismatch vs reference"

    print("KERNEL_OK")
</pallas_src>

<mosaic_0001>
module attributes {stable_mosaic.version = 11 : i64} {
  func.func @kernel(%arg0: memref<16x16xbf16, #tpu.memory_space<vmem>>, %arg1: memref<2x16xbf16, #tpu.memory_space<vmem>>, %arg2: memref<16x8xf32, #tpu.memory_space<vmem>>, %arg3: memref<16x8xf32, #tpu.memory_space<vmem>>, %arg4: memref<320x256xbf16, #tpu.memory_space<vmem>>, %arg5: memref<56x256xf32, #tpu.memory_space<vmem>>, %arg6: memref<2x4xf32, #tpu.memory_space<vmem>>) attributes {dimension_semantics = [], scalar_prefetch = 0 : i64, scratch_operands = 0 : i64, tpu.core_type = #tpu.core_type<tc>} {
    %c0 = arith.constant 0 : index
    %c0_0 = arith.constant 0 : index
    %0 = vector.load %arg0[%c0, %c0_0] : memref<16x16xbf16, #tpu.memory_space<vmem>>, vector<16x16xbf16>
    %c0_1 = arith.constant 0 : index
    %c0_2 = arith.constant 0 : index
    %1 = vector.load %arg2[%c0_1, %c0_2] : memref<16x8xf32, #tpu.memory_space<vmem>>, vector<16x8xf32>
    %c0_3 = arith.constant 0 : index
    %c0_4 = arith.constant 0 : index
    %2 = vector.load %arg4[%c0_3, %c0_4] : memref<320x256xbf16, #tpu.memory_space<vmem>>, vector<8x16xbf16>
    %3 = arith.truncf %1 : vector<16x8xf32> to vector<16x8xbf16>
    %cst = arith.constant dense<0.000000e+00> : vector<16x16xf32>
    %4 = tpu.matmul %3, %2, %cst {dimension_numbers = #tpu.dot_dimension_numbers<[1], [0], [0], [1], [0, 0, 1, 1], [], []>} : vector<16x8xbf16>, vector<8x16xbf16>, vector<16x16xf32> -> vector<16x16xf32>
    %5 = arith.truncf %4 : vector<16x16xf32> to vector<16x16xbf16>
    %cst_5 = arith.constant dense<0.000000e+00> : vector<16x16xf32>
    %6 = tpu.matmul %0, %5, %cst_5 {dimension_numbers = #tpu.dot_dimension_numbers<[1], [0], [0], [1], [0, 0, 1, 1], [], []>} : vector<16x16xbf16>, vector<16x16xbf16>, vector<16x16xf32> -> vector<16x16xf32>
    %c0_6 = arith.constant 0 : index
    %c0_7 = arith.constant 0 : index
    %7 = vector.load %arg5[%c0_6, %c0_7] : memref<56x256xf32, #tpu.memory_space<vmem>>, vector<1x16xf32>
    %8 = vector.broadcast %7 : vector<1x16xf32> to vector<16x16xf32>
    %9 = arith.addf %6, %8 : vector<16x16xf32>
    %cst_8 = arith.constant 0.000000e+00 : f32
    %10 = vector.broadcast %cst_8 : f32 to vector<16x16xf32>
    %11 = arith.maximumf %9, %10 : vector<16x16xf32>
    %c16 = arith.constant 16 : index
    %c0_9 = arith.constant 0 : index
    %12 = vector.load %arg4[%c16, %c0_9] : memref<320x256xbf16, #tpu.memory_space<vmem>>, vector<16x16xbf16>
    %13 = arith.truncf %11 : vector<16x16xf32> to vector<16x16xbf16>
    %cst_10 = arith.constant dense<0.000000e+00> : vector<16x16xf32>
    %14 = tpu.matmul %13, %12, %cst_10 {dimension_numbers = #tpu.dot_dimension_numbers<[1], [0], [0], [1], [0, 0, 1, 1], [], []>} : vector<16x16xbf16>, vector<16x16xbf16>, vector<16x16xf32> -> vector<16x16xf32>
    %15 = arith.truncf %14 : vector<16x16xf32> to vector<16x16xbf16>
    %cst_11 = arith.constant dense<0.000000e+00> : vector<16x16xf32>
    %16 = tpu.matmul %0, %15, %cst_11 {dimension_numbers = #tpu.dot_dimension_numbers<[1], [0], [0], [1], [0, 0, 1, 1], [], []>} : vector<16x16xbf16>, vector<16x16xbf16>, vector<16x16xf32> -> vector<16x16xf32>
    %c8 = arith.constant 8 : index
    %c0_12 = arith.constant 0 : index
    %17 = vector.load %arg5[%c8, %c0_12] : memref<56x256xf32, #tpu.memory_space<vmem>>, vector<1x16xf32>
    %18 = vector.broadcast %17 : vector<1x16xf32> to vector<16x16xf32>
    %19 = arith.addf %16, %18 : vector<16x16xf32>
    %cst_13 = arith.constant 0.000000e+00 : f32
    %20 = vector.broadcast %cst_13 : f32 to vector<16x16xf32>
    %21 = arith.maximumf %19, %20 : vector<16x16xf32>
    %c0_14 = arith.constant 0 : index
    %c0_15 = arith.constant 0 : index
    %22 = vector.load %arg1[%c0_14, %c0_15] : memref<2x16xbf16, #tpu.memory_space<vmem>>, vector<2x16xbf16>
    %23 = arith.truncf %21 : vector<16x16xf32> to vector<16x16xbf16>
    %cst_16 = arith.constant dense<0.000000e+00> : vector<2x16xf32>
    %24 = tpu.matmul %22, %23, %cst_16 {dimension_numbers = #tpu.dot_dimension_numbers<[1], [0], [0], [1], [0, 0, 1, 1], [], []>} : vector<2x16xbf16>, vector<16x16xbf16>, vector<2x16xf32> -> vector<2x16xf32>
    %c32 = arith.constant 32 : index
    %c0_17 = arith.constant 0 : index
    %25 = vector.load %arg4[%c32, %c0_17] : memref<320x256xbf16, #tpu.memory_space<vmem>>, vector<16x8xbf16>
    %26 = arith.truncf %24 : vector<2x16xf32> to vector<2x16xbf16>
    %cst_18 = arith.constant dense<0.000000e+00> : vector<2x8xf32>
    %27 = tpu.matmul %26, %25, %cst_18 {dimension_numbers = #tpu.dot_dimension_numbers<[1], [0], [0], [1], [0, 0, 1, 1], [], []>} : vector<2x16xbf16>, vector<16x8xbf16>, vector<2x8xf32> -> vector<2x8xf32>
    %c16_19 = arith.constant 16 : index
    %c0_20 = arith.constant 0 : index
    %28 = vector.load %arg5[%c16_19, %c0_20] : memref<56x256xf32, #tpu.memory_space<vmem>>, vector<1x8xf32>
    %29 = vector.broadcast %28 : vector<1x8xf32> to vector<2x8xf32>
    %30 = arith.addf %27, %29 : vector<2x8xf32>
    %c0_21 = arith.constant 0 : index
    %c0_22 = arith.constant 0 : index
    %31 = vector.load %arg3[%c0_21, %c0_22] : memref<16x8xf32, #tpu.memory_space<vmem>>, vector<16x8xf32>
    %c48 = arith.constant 48 : index
    %c0_23 = arith.constant 0 : index
    %32 = vector.load %arg4[%c48, %c0_23] : memref<320x256xbf16, #tpu.memory_space<vmem>>, vector<8x256xbf16>
    %33 = arith.truncf %31 : vector<16x8xf32> to vector<16x8xbf16>
    %cst_24 = arith.constant dense<0.000000e+00> : vector<16x256xf32>
    %34 = tpu.matmul %33, %32, %cst_24 {dimension_numbers = #tpu.dot_dimension_numbers<[1], [0], [0], [1], [0, 0, 1, 1], [], []>} : vector<16x8xbf16>, vector<8x256xbf16>, vector<16x256xf32> -> vector<16x256xf32>
    %c24 = arith.constant 24 : index
    %c0_25 = arith.constant 0 : index
    %35 = vector.load %arg5[%c24, %c0_25] : memref<56x256xf32, #tpu.memory_space<vmem>>, vector<1x256xf32>
    %36 = vector.broadcast %35 : vector<1x256xf32> to vector<16x256xf32>
    %37 = arith.addf %34, %36 : vector<16x256xf32>
    %c64 = arith.constant 64 : index
    %c0_26 = arith.constant 0 : index
    %38 = vector.load %arg4[%c64, %c0_26] : memref<320x256xbf16, #tpu.memory_space<vmem>>, vector<32x128xbf16>
    %cst_27 = arith.constant 0.000000e+00 : f32
    %39 = vector.broadcast %cst_27 : f32 to vector<2x32xf32>
    %cst_28 = arith.constant 0.000000e+00 : f32
    %40 = vector.broadcast %cst_28 : f32 to vector<2x32xf32>
    %41 = vector.extract_strided_slice %37 {offsets = [0, 0], sizes = [2, 128], strides = [1, 1]} : vector<16x256xf32> to vector<2x128xf32>
    %42 = arith.truncf %39 : vector<2x32xf32> to vector<2x32xbf16>
    %cst_29 = arith.constant dense<0.000000e+00> : vector<2x128xf32>
    %43 = tpu.matmul %42, %38, %cst_29 {dimension_numbers = #tpu.dot_dimension_numbers<[1], [0], [0], [1], [0, 0, 1, 1], [], []>} : vector<2x32xbf16>, vector<32x128xbf16>, vector<2x128xf32> -> vector<2x128xf32>
    %44 = arith.addf %41, %43 : vector<2x128xf32>
    %45 = arith.negf %44 : vector<2x128xf32>
    %46 = math.exp %45 : vector<2x128xf32>
    %cst_30 = arith.constant 1.000000e+00 : f32
    %47 = vector.broadcast %cst_30 : f32 to vector<2x128xf32>
    %48 = arith.addf %47, %46 : vector<2x128xf32>
    %49 = arith.divf %47, %48 : vector<2x128xf32>
    %50 = math.tanh %44 : vector<2x128xf32>
    %51 = vector.extract_strided_slice %49 {offsets = [0, 32], sizes = [2, 32], strides = [1, 1]} : vector<2x128xf32> to vector<2x32xf32>
    %52 = arith.mulf %51, %40 : vector<2x32xf32>
    %53 = vector.extract_strided_slice %49 {offsets = [0, 0], sizes = [2, 32], strides = [1, 1]} : vector<2x128xf32> to vector<2x32xf32>
    %54 = vector.extract_strided_slice %50 {offsets = [0, 64], sizes = [2, 32], strides = [1, 1]} : vector<2x128xf32> to vector<2x32xf32>
    %55 = arith.mulf %53, %54 : vector<2x32xf32>
    %56 = arith.addf %52, %55 : vector<2x32xf32>
    %57 = vector.extract_strided_slice %49 {offsets = [0, 96], sizes = [2, 32], strides = [1, 1]} : vector<2x128xf32> to vector<2x32xf32>
    %58 = math.tanh %56 : vector<2x32xf32>
    %59 = arith.mulf %57, %58 : vector<2x32xf32>
    %60 = vector.extract_strided_slice %37 {offsets = [2, 0], sizes = [2, 128], strides = [1, 1]} : vector<16x256xf32> to vector<2x128xf32>
    %61 = arith.truncf %59 : vector<2x32xf32> to vector<2x32xbf16>
    %cst_31 = arith.constant dense<0.000000e+00> : vector<2x128xf32>
    %62 = tpu.matmul %61, %38, %cst_31 {dimension_numbers = #tpu.dot_dimension_numbers<[1], [0], [0], [1], [0, 0, 1, 1], [], []>} : vector<2x32xbf16>, vector<32x128xbf16>, vector<2x128xf32> -> vector<2x128xf32>
    %63 = arith.addf %60, %62 : vector<2x128xf32>
    %64 = arith.negf %63 : vector<2x128xf32>
    %65 = math.exp %64 : vector<2x128xf32>
    %cst_32 = arith.constant 1.000000e+00 : f32
    %66 = vector.broadcast %cst_32 : f32 to vector<2x128xf32>
    %67 = arith.addf %66, %65 : vector<2x128xf32>
    %68 = arith.divf %66, %67 : vector<2x128xf32>
    %69 = math.tanh %63 : vector<2x128xf32>
    %70 = vector.extract_strided_slice %68 {offsets = [0, 32], sizes = [2, 32], strides = [1, 1]} : vector<2x128xf32> to vector<2x32xf32>
    %71 = arith.mulf %70, %56 : vector<2x32xf32>
    %72 = vector.extract_strided_slice %68 {offsets = [0, 0], sizes = [2, 32], strides = [1, 1]} : vector<2x128xf32> to vector<2x32xf32>
    %73 = vector.extract_strided_slice %69 {offsets = [0, 64], sizes = [2, 32], strides = [1, 1]} : vector<2x128xf32> to vector<2x32xf32>
    %74 = arith.mulf %72, %73 : vector<2x32xf32>
    %75 = arith.addf %71, %74 : vector<2x32xf32>
    %76 = vector.extract_strided_slice %68 {offsets = [0, 96], sizes = [2, 32], strides = [1, 1]} : vector<2x128xf32> to vector<2x32xf32>
    %77 = math.tanh %75 : vector<2x32xf32>
    %78 = arith.mulf %76, %77 : vector<2x32xf32>
    %79 = vector.extract_strided_slice %37 {offsets = [4, 0], sizes = [2, 128], strides = [1, 1]} : vector<16x256xf32> to vector<2x128xf32>
    %80 = arith.truncf %78 : vector<2x32xf32> to vector<2x32xbf16>
    %cst_33 = arith.constant dense<0.000000e+00> : vector<2x128xf32>
    %81 = tpu.matmul %80, %38, %cst_33 {dimension_numbers = #tpu.dot_dimension_numbers<[1], [0], [0], [1], [0, 0, 1, 1], [], []>} : vector<2x32xbf16>, vector<32x128xbf16>, vector<2x128xf32> -> vector<2x128xf32>
    %82 = arith.addf %79, %81 : vector<2x128xf32>
    %83 = arith.negf %82 : vector<2x128xf32>
    %84 = math.exp %83 : vector<2x128xf32>
    %cst_34 = arith.constant 1.000000e+00 : f32
    %85 = vector.broadcast %cst_34 : f32 to vector<2x128xf32>
    %86 = arith.addf %85, %84 : vector<2x128xf32>
    %87 = arith.divf %85, %86 : vector<2x128xf32>
    %88 = math.tanh %82 : vector<2x128xf32>
    %89 = vector.extract_strided_slice %87 {offsets = [0, 32], sizes = [2, 32], strides = [1, 1]} : vector<2x128xf32> to vector<2x32xf32>
    %90 = arith.mulf %89, %75 : vector<2x32xf32>
    %91 = vector.extract_strided_slice %87 {offsets = [0, 0], sizes = [2, 32], strides = [1, 1]} : vector<2x128xf32> to vector<2x32xf32>
    %92 = vector.extract_strided_slice %88 {offsets = [0, 64], sizes = [2, 32], strides = [1, 1]} : vector<2x128xf32> to vector<2x32xf32>
    %93 = arith.mulf %91, %92 : vector<2x32xf32>
    %94 = arith.addf %90, %93 : vector<2x32xf32>
    %95 = vector.extract_strided_slice %87 {offsets = [0, 96], sizes = [2, 32], strides = [1, 1]} : vector<2x128xf32> to vector<2x32xf32>
    %96 = math.tanh %94 : vector<2x32xf32>
    %97 = arith.mulf %95, %96 : vector<2x32xf32>
    %98 = vector.extract_strided_slice %37 {offsets = [6, 0], sizes = [2, 128], strides = [1, 1]} : vector<16x256xf32> to vector<2x128xf32>
    %99 = arith.truncf %97 : vector<2x32xf32> to vector<2x32xbf16>
    %cst_35 = arith.constant dense<0.000000e+00> : vector<2x128xf32>
    %100 = tpu.matmul %99, %38, %cst_35 {dimension_numbers = #tpu.dot_dimension_numbers<[1], [0], [0], [1], [0, 0, 1, 1], [], []>} : vector<2x32xbf16>, vector<32x128xbf16>, vector<2x128xf32> -> vector<2x128xf32>
    %101 = arith.addf %98, %100 : vector<2x128xf32>
    %102 = arith.negf %101 : vector<2x128xf32>
    %103 = math.exp %102 : vector<2x128xf32>
    %cst_36 = arith.constant 1.000000e+00 : f32
    %104 = vector.broadcast %cst_36 : f32 to vector<2x128xf32>
    %105 = arith.addf %104, %103 : vector<2x128xf32>
    %106 = arith.divf %104, %105 : vector<2x128xf32>
    %107 = math.tanh %101 : vector<2x128xf32>
    %108 = vector.extract_strided_slice %106 {offsets = [0, 32], sizes = [2, 32], strides = [1, 1]} : vector<2x128xf32> to vector<2x32xf32>
    %109 = arith.mulf %108, %94 : vector<2x32xf32>
    %110 = vector.extract_strided_slice %106 {offsets = [0, 0], sizes = [2, 32], strides = [1, 1]} : vector<2x128xf32> to vector<2x32xf32>
    %111 = vector.extract_strided_slice %107 {offsets = [0, 64], sizes = [2, 32], strides = [1, 1]} : vector<2x128xf32> to vector<2x32xf32>
    %112 = arith.mulf %110, %111 : vector<2x32xf32>
    %113 = arith.addf %109, %112 : vector<2x32xf32>
    %114 = vector.extract_strided_slice %106 {offsets = [0, 96], sizes = [2, 32], strides = [1, 1]} : vector<2x128xf32> to vector<2x32xf32>
    %115 = math.tanh %113 : vector<2x32xf32>
    %116 = arith.mulf %114, %115 : vector<2x32xf32>
    %117 = vector.extract_strided_slice %37 {offsets = [8, 0], sizes = [2, 128], strides = [1, 1]} : vector<16x256xf32> to vector<2x128xf32>
    %118 = arith.truncf %116 : vector<2x32xf32> to vector<2x32xbf16>
    %cst_37 = arith.constant dense<0.000000e+00> : vector<2x128xf32>
    %119 = tpu.matmul %118, %38, %cst_37 {dimension_numbers = #tpu.dot_dimension_numbers<[1], [0], [0], [1], [0, 0, 1, 1], [], []>} : vector<2x32xbf16>, vector<32x128xbf16>, vector<2x128xf32> -> vector<2x128xf32>
    %120 = arith.addf %117, %119 : vector<2x128xf32>
    %121 = arith.negf %120 : vector<2x128xf32>
    %122 = math.exp %121 : vector<2x128xf32>
    %cst_38 = arith.constant 1.000000e+00 : f32
    %123 = vector.broadcast %cst_38 : f32 to vector<2x128xf32>
    %124 = arith.addf %123, %122 : vector<2x128xf32>
    %125 = arith.divf %123, %124 : vector<2x128xf32>
    %126 = math.tanh %120 : vector<2x128xf32>
    %127 = vector.extract_strided_slice %125 {offsets = [0, 32], sizes = [2, 32], strides = [1, 1]} : vector<2x128xf32> to vector<2x32xf32>
    %128 = arith.mulf %127, %113 : vector<2x32xf32>
    %129 = vector.extract_strided_slice %125 {offsets = [0, 0], sizes = [2, 32], strides = [1, 1]} : vector<2x128xf32> to vector<2x32xf32>
    %130 = vector.extract_strided_slice %126 {offsets = [0, 64], sizes = [2, 32], strides = [1, 1]} : vector<2x128xf32> to vector<2x32xf32>
    %131 = arith.mulf %129, %130 : vector<2x32xf32>
    %132 = arith.addf %128, %131 : vector<2x32xf32>
    %133 = vector.extract_strided_slice %125 {offsets = [0, 96], sizes = [2, 32], strides = [1, 1]} : vector<2x128xf32> to vector<2x32xf32>
    %134 = math.tanh %132 : vector<2x32xf32>
    %135 = arith.mulf %133, %134 : vector<2x32xf32>
    %136 = vector.extract_strided_slice %37 {offsets = [10, 0], sizes = [2, 128], strides = [1, 1]} : vector<16x256xf32> to vector<2x128xf32>
    %137 = arith.truncf %135 : vector<2x32xf32> to vector<2x32xbf16>
    %cst_39 = arith.constant dense<0.000000e+00> : vector<2x128xf32>
    %138 = tpu.matmul %137, %38, %cst_39 {dimension_numbers = #tpu.dot_dimension_numbers<[1], [0], [0], [1], [0, 0, 1, 1], [], []>} : vector<2x32xbf16>, vector<32x128xbf16>, vector<2x128xf32> -> vector<2x128xf32>
    %139 = arith.addf %136, %138 : vector<2x128xf32>
    %140 = arith.negf %139 : vector<2x128xf32>
    %141 = math.exp %140 : vector<2x128xf32>
    %cst_40 = arith.constant 1.000000e+00 : f32
    %142 = vector.broadcast %cst_40 : f32 to vector<2x128xf32>
    %143 = arith.addf %142, %141 : vector<2x128xf32>
    %144 = arith.divf %142, %143 : vector<2x128xf32>
    %145 = math.tanh %139 : vector<2x128xf32>
    %146 = vector.extract_strided_slice %144 {offsets = [0, 32], sizes = [2, 32], strides = [1, 1]} : vector<2x128xf32> to vector<2x32xf32>
    %147 = arith.mulf %146, %132 : vector<2x32xf32>
    %148 = vector.extract_strided_slice %144 {offsets = [0, 0], sizes = [2, 32], strides = [1, 1]} : vector<2x128xf32> to vector<2x32xf32>
    %149 = vector.extract_strided_slice %145 {offsets = [0, 64], sizes = [2, 32], strides = [1, 1]} : vector<2x128xf32> to vector<2x32xf32>
    %150 = arith.mulf %148, %149 : vector<2x32xf32>
    %151 = arith.addf %147, %150 : vector<2x32xf32>
    %152 = vector.extract_strided_slice %144 {offsets = [0, 96], sizes = [2, 32], strides = [1, 1]} : vector<2x128xf32> to vector<2x32xf32>
    %153 = math.tanh %151 : vector<2x32xf32>
    %154 = arith.mulf %152, %153 : vector<2x32xf32>
    %155 = vector.extract_strided_slice %37 {offsets = [12, 0], sizes = [2, 128], strides = [1, 1]} : vector<16x256xf32> to vector<2x128xf32>
    %156 = arith.truncf %154 : vector<2x32xf32> to vector<2x32xbf16>
    %cst_41 = arith.constant dense<0.000000e+00> : vector<2x128xf32>
    %157 = tpu.matmul %156, %38, %cst_41 {dimension_numbers = #tpu.dot_dimension_numbers<[1], [0], [0], [1], [0, 0, 1, 1], [], []>} : vector<2x32xbf16>, vector<32x128xbf16>, vector<2x128xf32> -> vector<2x128xf32>
    %158 = arith.addf %155, %157 : vector<2x128xf32>
    %159 = arith.negf %158 : vector<2x128xf32>
    %160 = math.exp %159 : vector<2x128xf32>
    %cst_42 = arith.constant 1.000000e+00 : f32
    %161 = vector.broadcast %cst_42 : f32 to vector<2x128xf32>
    %162 = arith.addf %161, %160 : vector<2x128xf32>
    %163 = arith.divf %161, %162 : vector<2x128xf32>
    %164 = math.tanh %158 : vector<2x128xf32>
    %165 = vector.extract_strided_slice %163 {offsets = [0, 32], sizes = [2, 32], strides = [1, 1]} : vector<2x128xf32> to vector<2x32xf32>
    %166 = arith.mulf %165, %151 : vector<2x32xf32>
    %167 = vector.extract_strided_slice %163 {offsets = [0, 0], sizes = [2, 32], strides = [1, 1]} : vector<2x128xf32> to vector<2x32xf32>
    %168 = vector.extract_strided_slice %164 {offsets = [0, 64], sizes = [2, 32], strides = [1, 1]} : vector<2x128xf32> to vector<2x32xf32>
    %169 = arith.mulf %167, %168 : vector<2x32xf32>
    %170 = arith.addf %166, %169 : vector<2x32xf32>
    %171 = vector.extract_strided_slice %163 {offsets = [0, 96], sizes = [2, 32], strides = [1, 1]} : vector<2x128xf32> to vector<2x32xf32>
    %172 = math.tanh %170 : vector<2x32xf32>
    %173 = arith.mulf %171, %172 : vector<2x32xf32>
    %174 = vector.extract_strided_slice %37 {offsets = [14, 0], sizes = [2, 128], strides = [1, 1]} : vector<16x256xf32> to vector<2x128xf32>
    %175 = arith.truncf %173 : vector<2x32xf32> to vector<2x32xbf16>
    %cst_43 = arith.constant dense<0.000000e+00> : vector<2x128xf32>
    %176 = tpu.matmul %175, %38, %cst_43 {dimension_numbers = #tpu.dot_dimension_numbers<[1], [0], [0], [1], [0, 0, 1, 1], [], []>} : vector<2x32xbf16>, vector<32x128xbf16>, vector<2x128xf32> -> vector<2x128xf32>
    %177 = arith.addf %174, %176 : vector<2x128xf32>
    %178 = arith.negf %177 : vector<2x128xf32>
    %179 = math.exp %178 : vector<2x128xf32>
    %cst_44 = arith.constant 1.000000e+00 : f32
    %180 = vector.broadcast %cst_44 : f32 to vector<2x128xf32>
    %181 = arith.addf %180, %179 : vector<2x128xf32>
    %182 = arith.divf %180, %181 : vector<2x128xf32>
    %183 = math.tanh %177 : vector<2x128xf32>
    %184 = vector.extract_strided_slice %182 {offsets = [0, 32], sizes = [2, 32], strides = [1, 1]} : vector<2x128xf32> to vector<2x32xf32>
    %185 = arith.mulf %184, %170 : vector<2x32xf32>
    %186 = vector.extract_strided_slice %182 {offsets = [0, 0], sizes = [2, 32], strides = [1, 1]} : vector<2x128xf32> to vector<2x32xf32>
    %187 = vector.extract_strided_slice %183 {offsets = [0, 64], sizes = [2, 32], strides = [1, 1]} : vector<2x128xf32> to vector<2x32xf32>
    %188 = arith.mulf %186, %187 : vector<2x32xf32>
    %189 = arith.addf %185, %188 : vector<2x32xf32>
    %190 = vector.extract_strided_slice %182 {offsets = [0, 96], sizes = [2, 32], strides = [1, 1]} : vector<2x128xf32> to vector<2x32xf32>
    %191 = math.tanh %189 : vector<2x32xf32>
    %192 = arith.mulf %190, %191 : vector<2x32xf32>
    %193 = vector.extract_strided_slice %37 {offsets = [14, 128], sizes = [2, 128], strides = [1, 1]} : vector<16x256xf32> to vector<2x128xf32>
    %cst_45 = arith.constant 0.000000e+00 : f32
    %194 = vector.broadcast %cst_45 : f32 to vector<2x32xf32>
    %195 = arith.negf %193 : vector<2x128xf32>
    %196 = math.exp %195 : vector<2x128xf32>
    %cst_46 = arith.constant 1.000000e+00 : f32
    %197 = vector.broadcast %cst_46 : f32 to vector<2x128xf32>
    %198 = arith.addf %197, %196 : vector<2x128xf32>
    %199 = arith.divf %197, %198 : vector<2x128xf32>
    %200 = math.tanh %193 : vector<2x128xf32>
    %201 = vector.extract_strided_slice %199 {offsets = [0, 32], sizes = [2, 32], strides = [1, 1]} : vector<2x128xf32> to vector<2x32xf32>
    %202 = arith.mulf %201, %194 : vector<2x32xf32>
    %203 = vector.extract_strided_slice %199 {offsets = [0, 0], sizes = [2, 32], strides = [1, 1]} : vector<2x128xf32> to vector<2x32xf32>
    %204 = vector.extract_strided_slice %200 {offsets = [0, 64], sizes = [2, 32], strides = [1, 1]} : vector<2x128xf32> to vector<2x32xf32>
    %205 = arith.mulf %203, %204 : vector<2x32xf32>
    %206 = arith.addf %202, %205 : vector<2x32xf32>
    %207 = vector.extract_strided_slice %199 {offsets = [0, 96], sizes = [2, 32], strides = [1, 1]} : vector<2x128xf32> to vector<2x32xf32>
    %208 = math.tanh %206 : vector<2x32xf32>
    %209 = arith.mulf %207, %208 : vector<2x32xf32>
    %c96 = arith.constant 96 : index
    %c0_47 = arith.constant 0 : index
    %210 = vector.load %arg4[%c96, %c0_47] : memref<320x256xbf16, #tpu.memory_space<vmem>>, vector<32x1xbf16>
    %211 = arith.truncf %192 : vector<2x32xf32> to vector<2x32xbf16>
    %cst_48 = arith.constant dense<0.000000e+00> : vector<2x1xf32>
    %212 = tpu.matmul %211, %210, %cst_48 {dimension_numbers = #tpu.dot_dimension_numbers<[1], [0], [0], [1], [0, 0, 1, 1], [], []>} : vector<2x32xbf16>, vector<32x1xbf16>, vector<2x1xf32> -> vector<2x1xf32>
    %c128 = arith.constant 128 : index
    %c0_49 = arith.constant 0 : index
    %213 = vector.load %arg4[%c128, %c0_49] : memref<320x256xbf16, #tpu.memory_space<vmem>>, vector<32x1xbf16>
    %214 = arith.truncf %209 : vector<2x32xf32> to vector<2x32xbf16>
    %cst_50 = arith.constant dense<0.000000e+00> : vector<2x1xf32>
    %215 = tpu.matmul %214, %213, %cst_50 {dimension_numbers = #tpu.dot_dimension_numbers<[1], [0], [0], [1], [0, 0, 1, 1], [], []>} : vector<2x32xbf16>, vector<32x1xbf16>, vector<2x1xf32> -> vector<2x1xf32>
    %216 = arith.addf %212, %215 : vector<2x1xf32>
    %c32_51 = arith.constant 32 : index
    %c0_52 = arith.constant 0 : index
    %217 = vector.load %arg5[%c32_51, %c0_52] : memref<56x256xf32, #tpu.memory_space<vmem>>, vector<1x1xf32>
    %218 = vector.broadcast %217 : vector<1x1xf32> to vector<2x1xf32>
    %219 = arith.addf %216, %218 : vector<2x1xf32>
    %c160 = arith.constant 160 : index
    %c0_53 = arith.constant 0 : index
    %220 = vector.load %arg4[%c160, %c0_53] : memref<320x256xbf16, #tpu.memory_space<vmem>>, vector<8x128xbf16>
    %221 = arith.truncf %30 : vector<2x8xf32> to vector<2x8xbf16>
    %cst_54 = arith.constant dense<0.000000e+00> : vector<2x128xf32>
    %222 = tpu.matmul %221, %220, %cst_54 {dimension_numbers = #tpu.dot_dimension_numbers<[1], [0], [0], [1], [0, 0, 1, 1], [], []>} : vector<2x8xbf16>, vector<8x128xbf16>, vector<2x128xf32> -> vector<2x128xf32>
    %c176 = arith.constant 176 : index
    %c0_55 = arith.constant 0 : index
    %223 = vector.load %arg4[%c176, %c0_55] : memref<320x256xbf16, #tpu.memory_space<vmem>>, vector<1x128xbf16>
    %224 = arith.truncf %219 : vector<2x1xf32> to vector<2x1xbf16>
    %cst_56 = arith.constant dense<0.000000e+00> : vector<2x128xf32>
    %225 = tpu.matmul %224, %223, %cst_56 {dimension_numbers = #tpu.dot_dimension_numbers<[1], [0], [0], [1], [0, 0, 1, 1], [], []>} : vector<2x1xbf16>, vector<1x128xbf16>, vector<2x128xf32> -> vector<2x128xf32>
    %226 = arith.addf %222, %225 : vector<2x128xf32>
    %c40 = arith.constant 40 : index
    %c0_57 = arith.constant 0 : index
    %227 = vector.load %arg5[%c40, %c0_57] : memref<56x256xf32, #tpu.memory_space<vmem>>, vector<1x128xf32>
    %228 = vector.broadcast %227 : vector<1x128xf32> to vector<2x128xf32>
    %229 = arith.addf %226, %228 : vector<2x128xf32>
    %cst_58 = arith.constant 0.000000e+00 : f32
    %230 = vector.broadcast %cst_58 : f32 to vector<2x128xf32>
    %231 = arith.maximumf %229, %230 : vector<2x128xf32>
    %c192 = arith.constant 192 : index
    %c0_59 = arith.constant 0 : index
    %232 = vector.load %arg4[%c192, %c0_59] : memref<320x256xbf16, #tpu.memory_space<vmem>>, vector<128x4xbf16>
    %233 = arith.truncf %231 : vector<2x128xf32> to vector<2x128xbf16>
    %cst_60 = arith.constant dense<0.000000e+00> : vector<2x4xf32>
    %234 = tpu.matmul %233, %232, %cst_60 {dimension_numbers = #tpu.dot_dimension_numbers<[1], [0], [0], [1], [0, 0, 1, 1], [], []>} : vector<2x128xbf16>, vector<128x4xbf16>, vector<2x4xf32> -> vector<2x4xf32>
    %c48_61 = arith.constant 48 : index
    %c0_62 = arith.constant 0 : index
    %235 = vector.load %arg5[%c48_61, %c0_62] : memref<56x256xf32, #tpu.memory_space<vmem>>, vector<1x4xf32>
    %236 = vector.broadcast %235 : vector<1x4xf32> to vector<2x4xf32>
    %237 = arith.addf %234, %236 : vector<2x4xf32>
    %c0_63 = arith.constant 0 : index
    %c0_64 = arith.constant 0 : index
    %238 = vector.load %arg6[%c0_63, %c0_64] : memref<2x4xf32, #tpu.memory_space<vmem>>, vector<2x4xf32>
    tpu.vector_store %arg6[%c0_63, %c0_64], %237 {strides = array<i32>} : memref<2x4xf32, #tpu.memory_space<vmem>>, vector<2x4xf32>,
    return
  }
}

</mosaic_0001>

<llo_original>
// kernel: fwd.1
$region0: #{fwd.1}
  #allocation0 [shape = 'u32[]', space=smem, size = 0x4, offset = 0x4, fixed_abs, tag = 'smem constant byte address 0x4 - core index']
  #allocation1 [shape = 'u32[144,128]{1,0:T(1,128)}', space=vmem, size = 0x12000, scoped, tag = 'internal scratch']
  %s0 = inlined_call_operand.vmem [shape: bf16[16,16], index: 0, kind: input, shape index: {}]
  %s1 = inlined_call_operand.vmem [shape: bf16[2,16], index: 1, kind: input, shape index: {}]
  %s2 = inlined_call_operand.vmem [shape: f32[16,8], index: 2, kind: input, shape index: {}]
  %s3 = inlined_call_operand.vmem [shape: f32[16,8], index: 3, kind: input, shape index: {}]
  %s4 = inlined_call_operand.hbm [shape: bf16[320,256], index: 4, kind: input, shape index: {}]
  %s5 = inlined_call_operand.hbm [shape: f32[56,256], index: 5, kind: input, shape index: {}]
  %s6 = inlined_call_operand.hbm [shape: f32[2,4], index: 6, kind: output, shape index: {}]
  %s7 = sld [smem:[#allocation0]]
  $region42: #{fwd.1} parent=0
    _
  %s9 = ssub.s32 1, %s7
  %s10 = scalar_select 0, %s9, %s7
  $region1: #{fwd.1} parent=0
    #allocation2 [shape = 'u8[163840]{0}', space=vmem, size = 0x28000, scoped, tag = 'input window, operand 4, single buffered']
    #allocation3 [shape = 's32[1]{0}', space=sflag, size = 0x4, scoped, tag = 'scoped memory for fwd.1']
    #allocation4 [shape = 's32[1]{0}', space=sflag, size = 0x4, scoped, tag = 'scoped memory for fwd.1']
    #allocation5 [shape = 'u8[57344]{0}', space=vmem, size = 0xe000, scoped, tag = 'input window, operand 5, single buffered']
    #allocation6 [shape = 's32[1]{0}', space=sflag, size = 0x4, scoped, tag = 'scoped memory for fwd.1']
    #allocation7 [shape = 'u8[1024]{0}', space=vmem, size = 0x400, scoped, tag = 'output window, operand 0, single buffered']
    %11 = vsyncpa [#allocation3], 0
    %12 = vsyncpa [#allocation6], 0
    %13 = vsyncpa [#allocation4], 0
    // Predicated region
    $region2: #{fwd.1} parent=1 // pred_check
      _
    $region3: #{fwd.1} parent=1 // pred_check_branch
      %15 = sbr.rel (0) target = $region5
    $region4: #{fwd.1} parent=1 // pred_region
      _
    $region5: #{fwd.1} parent=1 // pred_fallthru
      _
    // Predicated region
    $region6: #{fwd.1} parent=1 // pred_check
      _
    $region7: #{fwd.1} parent=1 // pred_check_branch
      %17 = sbr.rel (0) target = $region9
    $region8: #{fwd.1} parent=1 // pred_region
      _
    $region9: #{fwd.1} parent=1 // pred_fallthru
      _
    // Predicated region
    $region10: #{fwd.1} parent=1 // pred_check
      _
    $region11: #{fwd.1} parent=1 // pred_check_branch
      %19 = sbr.rel (0) target = $region13
    $region12: #{fwd.1} parent=1 // pred_region
      _
    $region13: #{fwd.1} parent=1 // pred_fallthru
      _
    // Predicated region
    $region14: #{fwd.1} parent=1 // pred_check
      _
    $region15: #{fwd.1} parent=1 // pred_check_branch
      %21 = sbr.rel (0) target = $region17
    $region16: #{fwd.1} parent=1 // pred_region
      _
    $region17: #{fwd.1} parent=1 // pred_fallthru
      _
    // Predicated region
    $region18: #{fwd.1} parent=1 // pred_check
      _
    $region19: #{fwd.1} parent=1 // pred_check_branch
      %23 = sbr.rel (0) target = $region21
    $region20: #{fwd.1} parent=1 // pred_region
      %s25 = ssub.s32 5120, 5120
      %26 = vsyncadd [#allocation3], %s25
      %s27 = sshll.u32 [#allocation2], 4
      %s28 = int_to_ptr.vmem [resolvable:$true] %s27
      %33 = dma.hbm_to_vmem [thread:$0]  %s4, 5120, %s28, [#allocation3], 128, 128, 8
    $region21: #{fwd.1} parent=1 // pred_fallthru
      _
    // Predicated region
    $region22: #{fwd.1} parent=1 // pred_check
      _
    $region23: #{fwd.1} parent=1 // pred_check_branch
      %35 = sbr.rel (0) target = $region25
    $region24: #{fwd.1} parent=1 // pred_region
      %s37 = ssub.s32 1792, 1792
      %38 = vsyncadd [#allocation6], %s37
      %s39 = sshll.u32 [#allocation5], 4
      %s40 = int_to_ptr.vmem [resolvable:$true] %s39
      %45 = dma.hbm_to_vmem [thread:$0]  %s5, 1792, %s40, [#allocation6], 256, 256, 16
    $region25: #{fwd.1} parent=1 // pred_fallthru
      _
    // Predicated region
    $region26: #{fwd.1} parent=1 // pred_check
      _
    $region27: #{fwd.1} parent=1 // pred_check_branch
      %47 = sbr.rel (0) target = $region29
    $region28: #{fwd.1} parent=1 // pred_region
      %48 = dma.done [#allocation3], 5120
    $region29: #{fwd.1} parent=1 // pred_fallthru
      _
    // Predicated region
    $region30: #{fwd.1} parent=1 // pred_check
      _
    $region31: #{fwd.1} parent=1 // pred_check_branch
      %50 = sbr.rel (0) target = $region33
    $region32: #{fwd.1} parent=1 // pred_region
      %51 = dma.done [#allocation6], 1792
    $region33: #{fwd.1} parent=1 // pred_fallthru
      _
    %v53 = vld [vmem:[%s0] sm:$0xf]
    %v54 = vld [vmem:[%s0 + $0x4] sm:$0xf]
    %v55 = vld [vmem:[%s2] sm:$0xff]
    %v56 = vld [vmem:[%s2 + $0x8] sm:$0xff]
    %v57 = vld [vmem:[#allocation2] sm:$0xf]
    %v58 = vpack.c.bf16 %v56, %v55
    %vm59 = vcmask 64512
    %v61 = vsel %vm59, %v58, 0
    %vm63 = vcmask 1043456
    %v65 = vsel %vm63, %v57, 0
    %67 = vmatprep.subr.bf16.mxu0 0
    %68 = vmatpush1.bf16.msra.mxu0 0
    %69 = vmatprep.subr.bf16.mxu0 0
    %70 = vmatpush1.bf16.msra.mxu0 0
    %71 = vmatprep.subr.bf16.mxu0 0
    %72 = vmatpush1.bf16.msra.mxu0 0
    %73 = vmatprep.subr.bf16.mxu0 0
    %74 = vmatpush1.bf16.msra.mxu0 0
    %75 = vmatprep.subr.bf16.mxu0 0
    %76 = vmatpush1.bf16.msra.mxu0 0
    %77 = vmatprep.subr.bf16.mxu0 0
    %78 = vmatpush1.bf16.msra.mxu0 0
    %79 = vmatprep.subr.bf16.mxu0 0
    %80 = vmatpush1.bf16.msra.mxu0 0
    %81 = vmatprep.subr.bf16.mxu0 0
    %82 = vmatpush1.bf16.msra.mxu0 %v65
    %83 = vmatprep.subr.bf16.mxu0 0
    %84 = vmatpush2.bf16.msra.mxu0 0
    %85 = vmatprep.subr.bf16.mxu0 0
    %86 = vmatpush2.bf16.msra.mxu0 0
    %87 = vmatprep.subr.bf16.mxu0 0
    %88 = vmatpush2.bf16.msra.mxu0 0
    %89 = vmatprep.subr.bf16.mxu0 0
    %90 = vmatpush2.bf16.msra.mxu0 0
    %91 = vmatprep.subr.bf16.mxu0 0
    %92 = vmatpush2.bf16.msra.mxu0 0
    %93 = vmatprep.subr.bf16.mxu0 0
    %94 = vmatpush2.bf16.msra.mxu0 0
    %95 = vmatprep.subr.bf16.mxu0 0
    %96 = vmatpush2.bf16.msra.mxu0 0
    %97 = vmatprep.subr.bf16.mxu0 0
    %98 = vmatpush2.bf16.msra.mxu0 0
    %99 = vmatprep.mubr.bf16.mxu0 0
    %100 = vmatmul.mubr.bf16.gmra.mxu0 %v61
    %v101 = vpop.f32.mrf.mxu0
    %v102 = vadd.f32 0.0, %v101
    %v103 = vpop.f32.mrf.mxu0
    %v104 = vpop.f32.mrf.mxu0
    %v105 = vadd.f32 0.0, %v104
    %v106 = vpop.f32.mrf.mxu0
    %107 = vdwg.mxu0
    %v108 = vpack.c.bf16 %v105, %v102
    %v109 = vld [vmem:[#allocation5] ss:$0 sm:$0xff]
    %v112 = vunpack.c.l.b16 %v53
    %v113 = vunpack.c.l.b16 %v54
    %v114 = vpack.c.b16 %v113, %v112
    %vm115 = vcmask 130048
    %v117 = vsel %vm115, %v114, 0
    %119 = vmatprep.subr.bf16.mxu0 0
    %120 = vmatpush1.bf16.msra.mxu0 0
    %121 = vmatprep.subr.bf16.mxu0 0
    %122 = vmatpush1.bf16.msra.mxu0 0
    %123 = vmatprep.subr.bf16.mxu0 0
    %124 = vmatpush1.bf16.msra.mxu0 0
    %125 = vmatprep.subr.bf16.mxu0 0
    %126 = vmatpush1.bf16.msra.mxu0 0
    %127 = vmatprep.subr.bf16.mxu0 0
    %128 = vmatpush1.bf16.msra.mxu0 0
    %129 = vmatprep.subr.bf16.mxu0 0
    %130 = vmatpush1.bf16.msra.mxu0 0
    %131 = vmatprep.subr.bf16.mxu0 0
    %132 = vmatpush1.bf16.msra.mxu0 0
    %133 = vmatprep.subr.bf16.mxu0 0
    %134 = vmatpush1.bf16.msra.mxu0 %v108
    %135 = vmatprep.subr.bf16.mxu0 0
    %136 = vmatpush2.bf16.msra.mxu0 0
    %137 = vmatprep.subr.bf16.mxu0 0
    %138 = vmatpush2.bf16.msra.mxu0 0
    %139 = vmatprep.subr.bf16.mxu0 0
    %140 = vmatpush2.bf16.msra.mxu0 0
    %141 = vmatprep.subr.bf16.mxu0 0
    %142 = vmatpush2.bf16.msra.mxu0 0
    %143 = vmatprep.subr.bf16.mxu0 0
    %144 = vmatpush2.bf16.msra.mxu0 0
    %145 = vmatprep.subr.bf16.mxu0 0
    %146 = vmatpush2.bf16.msra.mxu0 0
    %147 = vmatprep.subr.bf16.mxu0 0
    %148 = vmatpush2.bf16.msra.mxu0 0
    %149 = vmatprep.subr.bf16.mxu0 0
    %150 = vmatpush2.bf16.msra.mxu0 0
    %151 = vmatprep.mubr.bf16.mxu0 0
    %152 = vmatmul.mubr.bf16.gmra.mxu0 %v117
    %v153 = vpop.f32.mrf.mxu0
    %v154 = vadd.f32 %v109, %v153
    %v155 = vpop.f32.mrf.mxu0
    %v156 = vpop.f32.mrf.mxu0
    %v157 = vadd.f32 %v109, %v156
    %v158 = vpop.f32.mrf.mxu0
    %159 = vdwg.mxu0
    %v160 = vmax.f32 %v154, 0.0
    %v161 = vmax.f32 %v157, 0.0
    %v162 = vld [vmem:[#allocation2 + $0x10] sm:$0xf]
    %v163 = vld [vmem:[#allocation2 + $0x18] sm:$0xf]
    %v164 = vpack.c.bf16 %v161, %v160
    %v167 = vunpack.c.l.b16 %v162
    %v168 = vunpack.c.l.b16 %v163
    %v169 = vpack.c.b16 %v168, %v167
    %v172 = vsel %vm115, %v164, 0
    %174 = vmatprep.subr.bf16.mxu0 0
    %175 = vmatpush1.bf16.msra.mxu0 0
    %176 = vmatprep.subr.bf16.mxu0 0
    %177 = vmatpush1.bf16.msra.mxu0 0
    %178 = vmatprep.subr.bf16.mxu0 0
    %179 = vmatpush1.bf16.msra.mxu0 0
    %180 = vmatprep.subr.bf16.mxu0 0
    %181 = vmatpush1.bf16.msra.mxu0 0
    %182 = vmatprep.subr.bf16.mxu0 0
    %183 = vmatpush1.bf16.msra.mxu0 0
    %184 = vmatprep.subr.bf16.mxu0 0
    %185 = vmatpush1.bf16.msra.mxu0 0
    %186 = vmatprep.subr.bf16.mxu0 0
    %187 = vmatpush1.bf16.msra.mxu0 0
    %188 = vmatprep.subr.bf16.mxu0 0
    %189 = vmatpush1.bf16.msra.mxu0 %v169
    %190 = vmatprep.subr.bf16.mxu0 0
    %191 = vmatpush2.bf16.msra.mxu0 0
    %192 = vmatprep.subr.bf16.mxu0 0
    %193 = vmatpush2.bf16.msra.mxu0 0
    %194 = vmatprep.subr.bf16.mxu0 0
    %195 = vmatpush2.bf16.msra.mxu0 0
    %196 = vmatprep.subr.bf16.mxu0 0
    %197 = vmatpush2.bf16.msra.mxu0 0
    %198 = vmatprep.subr.bf16.mxu0 0
    %199 = vmatpush2.bf16.msra.mxu0 0
    %200 = vmatprep.subr.bf16.mxu0 0
    %201 = vmatpush2.bf16.msra.mxu0 0
    %202 = vmatprep.subr.bf16.mxu0 0
    %203 = vmatpush2.bf16.msra.mxu0 0
    %204 = vmatprep.subr.bf16.mxu0 0
    %205 = vmatpush2.bf16.msra.mxu0 0
    %206 = vmatprep.mubr.bf16.mxu0 0
    %207 = vmatmul.mubr.bf16.gmra.mxu0 %v172
    %v208 = vpop.f32.mrf.mxu0
    %v209 = vadd.f32 0.0, %v208
    %v210 = vpop.f32.mrf.mxu0
    %v211 = vpop.f32.mrf.mxu0
    %v212 = vadd.f32 0.0, %v211
    %v213 = vpop.f32.mrf.mxu0
    %214 = vdwg.mxu0
    %v215 = vpack.c.bf16 %v212, %v209
    %v216 = vld [vmem:[#allocation5 + $0x10] ss:$0 sm:$0xff]
    %217 = vmatprep.subr.bf16.mxu0 0
    %218 = vmatpush1.bf16.msra.mxu0 0
    %219 = vmatprep.subr.bf16.mxu0 0
    %220 = vmatpush1.bf16.msra.mxu0 0
    %221 = vmatprep.subr.bf16.mxu0 0
    %222 = vmatpush1.bf16.msra.mxu0 0
    %223 = vmatprep.subr.bf16.mxu0 0
    %224 = vmatpush1.bf16.msra.mxu0 0
    %225 = vmatprep.subr.bf16.mxu0 0
    %226 = vmatpush1.bf16.msra.mxu0 0
    %227 = vmatprep.subr.bf16.mxu0 0
    %228 = vmatpush1.bf16.msra.mxu0 0
    %229 = vmatprep.subr.bf16.mxu0 0
    %230 = vmatpush1.bf16.msra.mxu0 0
    %231 = vmatprep.subr.bf16.mxu0 0
    %232 = vmatpush1.bf16.msra.mxu0 %v215
    %233 = vmatprep.subr.bf16.mxu0 0
    %234 = vmatpush2.bf16.msra.mxu0 0
    %235 = vmatprep.subr.bf16.mxu0 0
    %236 = vmatpush2.bf16.msra.mxu0 0
    %237 = vmatprep.subr.bf16.mxu0 0
    %238 = vmatpush2.bf16.msra.mxu0 0
    %239 = vmatprep.subr.bf16.mxu0 0
    %240 = vmatpush2.bf16.msra.mxu0 0
    %241 = vmatprep.subr.bf16.mxu0 0
    %242 = vmatpush2.bf16.msra.mxu0 0
    %243 = vmatprep.subr.bf16.mxu0 0
    %244 = vmatpush2.bf16.msra.mxu0 0
    %245 = vmatprep.subr.bf16.mxu0 0
    %246 = vmatpush2.bf16.msra.mxu0 0
    %247 = vmatprep.subr.bf16.mxu0 0
    %248 = vmatpush2.bf16.msra.mxu0 0
    %249 = vmatprep.mubr.bf16.mxu0 0
    %250 = vmatmul.mubr.bf16.gmra.mxu0 %v117
    %v251 = vpop.f32.mrf.mxu0
    %v252 = vadd.f32 %v216, %v251
    %v253 = vpop.f32.mrf.mxu0
    %v254 = vpop.f32.mrf.mxu0
    %v255 = vadd.f32 %v216, %v254
    %v256 = vpop.f32.mrf.mxu0
    %257 = vdwg.mxu0
    %v258 = vmax.f32 %v252, 0.0
    %v259 = vmax.f32 %v255, 0.0
    %v260 = vld [vmem:[%s1] sm:$0x1]
    %v261 = vpack.c.bf16 %v259, %v258
    %v263 = vsel %vm115, %v260, 0
    %265 = vmatprep.subr.bf16.mxu0 0
    %266 = vmatpush1.bf16.msra.mxu0 0
    %267 = vmatprep.subr.bf16.mxu0 0
    %268 = vmatpush1.bf16.msra.mxu0 0
    %269 = vmatprep.subr.bf16.mxu0 0
    %270 = vmatpush1.bf16.msra.mxu0 0
    %271 = vmatprep.subr.bf16.mxu0 0
    %272 = vmatpush1.bf16.msra.mxu0 0
    %273 = vmatprep.subr.bf16.mxu0 0
    %274 = vmatpush1.bf16.msra.mxu0 0
    %275 = vmatprep.subr.bf16.mxu0 0
    %276 = vmatpush1.bf16.msra.mxu0 0
    %277 = vmatprep.subr.bf16.mxu0 0
    %278 = vmatpush1.bf16.msra.mxu0 0
    %279 = vmatprep.subr.bf16.mxu0 0
    %280 = vmatpush1.bf16.msra.mxu0 %v261
    %281 = vmatprep.subr.bf16.mxu0 0
    %282 = vmatpush2.bf16.msra.mxu0 0
    %283 = vmatprep.subr.bf16.mxu0 0
    %284 = vmatpush2.bf16.msra.mxu0 0
    %285 = vmatprep.subr.bf16.mxu0 0
    %286 = vmatpush2.bf16.msra.mxu0 0
    %287 = vmatprep.subr.bf16.mxu0 0
    %288 = vmatpush2.bf16.msra.mxu0 0
    %289 = vmatprep.subr.bf16.mxu0 0
    %290 = vmatpush2.bf16.msra.mxu0 0
    %291 = vmatprep.subr.bf16.mxu0 0
    %292 = vmatpush2.bf16.msra.mxu0 0
    %293 = vmatprep.subr.bf16.mxu0 0
    %294 = vmatpush2.bf16.msra.mxu0 0
    %295 = vmatprep.subr.bf16.mxu0 0
    %296 = vmatpush2.bf16.msra.mxu0 0
    %297 = vmatprep.mubr.bf16.mxu0 0
    %298 = vmatmul.mubr.bf16.gmra.mxu0 %v263
    %v299 = vpop.f32.mrf.mxu0
    %v300 = vadd.f32 0.0, %v299
    %v301 = vpop.f32.mrf.mxu0
    %v302 = vpop.f32.mrf.mxu0
    %v303 = vpop.f32.mrf.mxu0
    %304 = vdwg.mxu0
    %v305 = vld [vmem:[#allocation2 + $0x20] sm:$0xf]
    %v306 = vld [vmem:[#allocation2 + $0x28] sm:$0xf]
    %v307 = vpack.c.bf16 %v300, %v300
    %v308 = vld [vmem:[#allocation5 + $0x20] ss:$0 sm:$0xff]
    %v311 = vunpack.c.l.b16 %v305
    %v312 = vunpack.c.l.b16 %v306
    %v313 = vpack.c.b16 %v312, %v311
    %v316 = vsel %vm115, %v307, 0
    %318 = vmatprep.subr.bf16.mxu0 0
    %319 = vmatpush1.bf16.msra.mxu0 0
    %320 = vmatprep.subr.bf16.mxu0 0
    %321 = vmatpush1.bf16.msra.mxu0 0
    %322 = vmatprep.subr.bf16.mxu0 0
    %323 = vmatpush1.bf16.msra.mxu0 0
    %324 = vmatprep.subr.bf16.mxu0 0
    %325 = vmatpush1.bf16.msra.mxu0 0
    %326 = vmatprep.subr.bf16.mxu0 0
    %327 = vmatpush1.bf16.msra.mxu0 0
    %328 = vmatprep.subr.bf16.mxu0 0
    %329 = vmatpush1.bf16.msra.mxu0 0
    %330 = vmatprep.subr.bf16.mxu0 0
    %331 = vmatpush1.bf16.msra.mxu0 0
    %332 = vmatprep.subr.bf16.mxu0 0
    %333 = vmatpush1.bf16.msra.mxu0 %v313
    %334 = vmatprep.subr.bf16.mxu0 0
    %335 = vmatpush2.bf16.msra.mxu0 0
    %336 = vmatprep.subr.bf16.mxu0 0
    %337 = vmatpush2.bf16.msra.mxu0 0
    %338 = vmatprep.subr.bf16.mxu0 0
    %339 = vmatpush2.bf16.msra.mxu0 0
    %340 = vmatprep.subr.bf16.mxu0 0
    %341 = vmatpush2.bf16.msra.mxu0 0
    %342 = vmatprep.subr.bf16.mxu0 0
    %343 = vmatpush2.bf16.msra.mxu0 0
    %344 = vmatprep.subr.bf16.mxu0 0
    %345 = vmatpush2.bf16.msra.mxu0 0
    %346 = vmatprep.subr.bf16.mxu0 0
    %347 = vmatpush2.bf16.msra.mxu0 0
    %348 = vmatprep.subr.bf16.mxu0 0
    %349 = vmatpush2.bf16.msra.mxu0 0
    %350 = vmatprep.mubr.bf16.mxu0 0
    %351 = vmatmul.mubr.bf16.gmra.mxu0 %v316
    %v352 = vpop.f32.mrf.mxu0
    %v353 = vadd.f32 %v308, %v352
    %v354 = vpop.f32.mrf.mxu0
    %v355 = vpop.f32.mrf.mxu0
    %v356 = vpop.f32.mrf.mxu0
    %357 = vdwg.mxu0
    %v358 = vld [vmem:[%s3] sm:$0xff]
    %v359 = vld [vmem:[%s3 + $0x8] sm:$0xff]
    %v360 = vld [vmem:[#allocation2 + $0x30] sm:$0xff]
    %v361 = vpack.c.bf16 %v359, %v358
    %s362 = scalar_lea.vmem [#allocation5], 48
    %v363 = vld [vmem:[%s362] ss:$8 sm:$0x3]
    %v365 = vlaneseq
    %v366 = vshrl.u32 %v365, 7
    %v367 = vsub.s32 0, %v366
    %v368 = vrot.slane %v363, %v367
    %v369 = vlaneseq
    %v370 = vshrl.u32 %v369, 7
    %v371 = vsub.s32 1, %v370
    %v372 = vrot.slane %v363, %v371
    %v376 = vunpack.c.l.b16 %v360
    %v377 = vunpack.c.h.b16 %v360
    %v378 = vpack.c.b16 %v376, %v376
    %v379 = vpack.c.b16 %v377, %v377
    %v381 = vsel %vm59, %v361, 0
    %v384 = vsel %vm63, %v378, 0
    %v387 = vsel %vm63, %v379, 0
    %389 = vmatprep.subr.bf16.mxu0 0
    %390 = vmatpush1.bf16.msra.mxu0 0
    %391 = vmatprep.subr.bf16.mxu0 0
    %392 = vmatpush1.bf16.msra.mxu0 0
    %393 = vmatprep.subr.bf16.mxu0 0
    %394 = vmatpush1.bf16.msra.mxu0 0
    %395 = vmatprep.subr.bf16.mxu0 0
    %396 = vmatpush1.bf16.msra.mxu0 0
    %397 = vmatprep.subr.bf16.mxu0 0
    %398 = vmatpush1.bf16.msra.mxu0 0
    %399 = vmatprep.subr.bf16.mxu0 0
    %400 = vmatpush1.bf16.msra.mxu0 0
    %401 = vmatprep.subr.bf16.mxu0 0
    %402 = vmatpush1.bf16.msra.mxu0 0
    %403 = vmatprep.subr.bf16.mxu0 %v387
    %404 = vmatpush1.bf16.msra.mxu0 %v384
    %405 = vmatprep.subr.bf16.mxu0 0
    %406 = vmatpush2.bf16.msra.mxu0 0
    %407 = vmatprep.subr.bf16.mxu0 0
    %408 = vmatpush2.bf16.msra.mxu0 0
    %409 = vmatprep.subr.bf16.mxu0 0
    %410 = vmatpush2.bf16.msra.mxu0 0
    %411 = vmatprep.subr.bf16.mxu0 0
    %412 = vmatpush2.bf16.msra.mxu0 0
    %413 = vmatprep.subr.bf16.mxu0 0
    %414 = vmatpush2.bf16.msra.mxu0 0
    %415 = vmatprep.subr.bf16.mxu0 0
    %416 = vmatpush2.bf16.msra.mxu0 0
    %417 = vmatprep.subr.bf16.mxu0 0
    %418 = vmatpush2.bf16.msra.mxu0 0
    %419 = vmatprep.subr.bf16.mxu0 0
    %420 = vmatpush2.bf16.msra.mxu0 0
    %421 = vmatprep.mubr.bf16.mxu0 0
    %422 = vmatmul.mubr.bf16.gmra.mxu0 %v381
    %v423 = vpop.f32.mrf.mxu0
    %v424 = vadd.f32 %v368, %v423
    %v425 = vpop.f32.mrf.mxu0
    %v426 = vpop.f32.mrf.mxu0
    %v427 = vadd.f32 %v368, %v426
    %v428 = vpop.f32.mrf.mxu0
    %v429 = vadd.f32 %v372, %v428
    %430 = vdwg.mxu0
    %v431 = vld [vmem:[#allocation2 + $0x40] sm:$0xf]
    %v432 = vld [vmem:[#allocation2 + $0x48] sm:$0xf]
    %v433 = vld [vmem:[#allocation2 + $0x50] sm:$0xf]
    %v434 = vld [vmem:[#allocation2 + $0x58] sm:$0xf]
    %v439 = vunpack.c.l.b16 %v431
    %v440 = vunpack.c.l.b16 %v432
    %v441 = vunpack.c.l.b16 %v433
    %v442 = vunpack.c.l.b16 %v434
    %v443 = vpack.c.b16 %v440, %v439
    %v444 = vpack.c.b16 %v442, %v441
    %vm447 = vcmask 261120
    %v449 = vsel %vm447, 0, 0
    %451 = vmatprep.subr.bf16.mxu0 0
    %452 = vmatpush1.bf16.msra.mxu0 0
    %453 = vmatprep.subr.bf16.mxu0 0
    %454 = vmatpush1.bf16.msra.mxu0 0
    %455 = vmatprep.subr.bf16.mxu0 0
    %456 = vmatpush1.bf16.msra.mxu0 0
    %457 = vmatprep.subr.bf16.mxu0 0
    %458 = vmatpush1.bf16.msra.mxu0 0
    %459 = vmatprep.subr.bf16.mxu0 0
    %460 = vmatpush1.bf16.msra.mxu0 0
    %461 = vmatprep.subr.bf16.mxu0 0
    %462 = vmatpush1.bf16.msra.mxu0 0
    %463 = vmatprep.subr.bf16.mxu0 0
    %464 = vmatpush1.bf16.msra.mxu0 %v444
    %465 = vmatprep.subr.bf16.mxu0 0
    %466 = vmatpush1.bf16.msra.mxu0 %v443
    %467 = vmatprep.subr.bf16.mxu0 0
    %468 = vmatpush2.bf16.msra.mxu0 0
    %469 = vmatprep.subr.bf16.mxu0 0
    %470 = vmatpush2.bf16.msra.mxu0 0
    %471 = vmatprep.subr.bf16.mxu0 0
    %472 = vmatpush2.bf16.msra.mxu0 0
    %473 = vmatprep.subr.bf16.mxu0 0
    %474 = vmatpush2.bf16.msra.mxu0 0
    %475 = vmatprep.subr.bf16.mxu0 0
    %476 = vmatpush2.bf16.msra.mxu0 0
    %477 = vmatprep.subr.bf16.mxu0 0
    %478 = vmatpush2.bf16.msra.mxu0 0
    %479 = vmatprep.subr.bf16.mxu0 0
    %480 = vmatpush2.bf16.msra.mxu0 0
    %481 = vmatprep.subr.bf16.mxu0 0
    %482 = vmatpush2.bf16.msra.mxu0 0
    %483 = vmatprep.mubr.bf16.mxu0 0
    %484 = vmatmul.mubr.bf16.gmra.mxu0 %v449
    %v485 = vpop.f32.mrf.mxu0
    %v486 = vadd.f32 0.0, %v485
    %v487 = vpop.f32.mrf.mxu0
    %v488 = vpop.f32.mrf.mxu0
    %v489 = vpop.f32.mrf.mxu0
    %490 = vdwg.mxu0
    %v491 = vadd.f32 %v424, %v486
    %v492 = vxor.u32 %v491, 2147483648
    %v493 = vmul.f32 %v492, 1.442695
    %v494 = vpow.pop %v493
    %v495 = vadd.f32 %v494, 1.0
    %v496 = vrcp.pop %v495
    %v497 = vmul.f32 1.0, %v496
    %v498 = vtanh.pop %v491
    %v499 = vmul.f32 %v497, 0.0
    %501 = vrot.lane.b32.xlu0 %v498, 64
    %v502 = vpop.permute.xlu0 %501
    %v504 = vmul.f32 %v497, %v502
    %506 = vrot.lane.b32.xlu0 %v504, 32
    %v507 = vpop.permute.xlu0 %506
    %v509 = vadd.f32 %v499, %v507
    %v510 = vtanh.pop %v509
    %512 = vrot.lane.b32.xlu0 %v510, 64
    %v513 = vpop.permute.xlu0 %512
    %v515 = vmul.f32 %v497, %v513
    %v516 = vpack.c.bf16 %v515, %v515
    %518 = vrot.lane.b32.xlu0 %v516, 32
    %v519 = vpop.permute.xlu0 %518
    %v521 = vsel %vm447, %v519, 0
    %523 = vmatprep.subr.bf16.mxu0 0
    %524 = vmatpush1.bf16.msra.mxu0 0
    %525 = vmatprep.subr.bf16.mxu0 0
    %526 = vmatpush1.bf16.msra.mxu0 0
    %527 = vmatprep.subr.bf16.mxu0 0
    %528 = vmatpush1.bf16.msra.mxu0 0
    %529 = vmatprep.subr.bf16.mxu0 0
    %530 = vmatpush1.bf16.msra.mxu0 0
    %531 = vmatprep.subr.bf16.mxu0 0
    %532 = vmatpush1.bf16.msra.mxu0 0
    %533 = vmatprep.subr.bf16.mxu0 0
    %534 = vmatpush1.bf16.msra.mxu0 0
    %535 = vmatprep.subr.bf16.mxu0 0
    %536 = vmatpush1.bf16.msra.mxu0 %v444
    %537 = vmatprep.subr.bf16.mxu0 0
    %538 = vmatpush1.bf16.msra.mxu0 %v443
    %539 = vmatprep.subr.bf16.mxu0 0
    %540 = vmatpush2.bf16.msra.mxu0 0
    %541 = vmatprep.subr.bf16.mxu0 0
    %542 = vmatpush2.bf16.msra.mxu0 0
    %543 = vmatprep.subr.bf16.mxu0 0
    %544 = vmatpush2.bf16.msra.mxu0 0
    %545 = vmatprep.subr.bf16.mxu0 0
    %546 = vmatpush2.bf16.msra.mxu0 0
    %547 = vmatprep.subr.bf16.mxu0 0
    %548 = vmatpush2.bf16.msra.mxu0 0
    %549 = vmatprep.subr.bf16.mxu0 0
    %550 = vmatpush2.bf16.msra.mxu0 0
    %551 = vmatprep.subr.bf16.mxu0 0
    %552 = vmatpush2.bf16.msra.mxu0 0
    %553 = vmatprep.subr.bf16.mxu0 0
    %554 = vmatpush2.bf16.msra.mxu0 0
    %555 = vmatprep.mubr.bf16.mxu0 0
    %556 = vmatmul.mubr.bf16.gmra.mxu0 %v521
    %v557 = vpop.f32.mrf.mxu0
    %v558 = vadd.f32 0.0, %v557
    %v559 = vpop.f32.mrf.mxu0
    %v560 = vpop.f32.mrf.mxu0
    %v561 = vpop.f32.mrf.mxu0
    %562 = vdwg.mxu0
    %v564 = vrot.slane %v558, 6
    %v566 = vadd.f32 %v424, %v564
    %v567 = vxor.u32 %v566, 2147483648
    %v568 = vmul.f32 %v567, 1.442695
    %v569 = vpow.pop %v568
    %v570 = vadd.f32 %v569, 1.0
    %v571 = vrcp.pop %v570
    %v572 = vmul.f32 1.0, %v571
    %v573 = vtanh.pop %v566
    %v575 = vrot.slane %v509, 6
    %v577 = vmul.f32 %v572, %v575
    %579 = vrot.lane.b32.xlu0 %v573, 64
    %v580 = vpop.permute.xlu0 %579
    %v582 = vmul.f32 %v572, %v580
    %584 = vrot.lane.b32.xlu0 %v582, 32
    %v585 = vpop.permute.xlu0 %584
    %v587 = vadd.f32 %v577, %v585
    %v588 = vtanh.pop %v587
    %590 = vrot.lane.b32.xlu0 %v588, 64
    %v591 = vpop.permute.xlu0 %590
    %v593 = vmul.f32 %v572, %v591
    %v594 = vpack.c.bf16 %v593, %v593
    %v596 = vrot.slane %v594, 1
    %597 = vrot.lane.b32.xlu0 %v596, 32
    %v598 = vpop.permute.xlu0 %597
    %v600 = vsel %vm447, %v598, 0
    %602 = vmatprep.subr.bf16.mxu0 0
    %603 = vmatpush1.bf16.msra.mxu0 0
    %604 = vmatprep.subr.bf16.mxu0 0
    %605 = vmatpush1.bf16.msra.mxu0 0
    %606 = vmatprep.subr.bf16.mxu0 0
    %607 = vmatpush1.bf16.msra.mxu0 0
    %608 = vmatprep.subr.bf16.mxu0 0
    %609 = vmatpush1.bf16.msra.mxu0 0
    %610 = vmatprep.subr.bf16.mxu0 0
    %611 = vmatpush1.bf16.msra.mxu0 0
    %612 = vmatprep.subr.bf16.mxu0 0
    %613 = vmatpush1.bf16.msra.mxu0 0
    %614 = vmatprep.subr.bf16.mxu0 0
    %615 = vmatpush1.bf16.msra.mxu0 %v444
    %616 = vmatprep.subr.bf16.mxu0 0
    %617 = vmatpush1.bf16.msra.mxu0 %v443
    %618 = vmatprep.subr.bf16.mxu0 0
    %619 = vmatpush2.bf16.msra.mxu0 0
    %620 = vmatprep.subr.bf16.mxu0 0
    %621 = vmatpush2.bf16.msra.mxu0 0
    %622 = vmatprep.subr.bf16.mxu0 0
    %623 = vmatpush2.bf16.msra.mxu0 0
    %624 = vmatprep.subr.bf16.mxu0 0
    %625 = vmatpush2.bf16.msra.mxu0 0
    %626 = vmatprep.subr.bf16.mxu0 0
    %627 = vmatpush2.bf16.msra.mxu0 0
    %628 = vmatprep.subr.bf16.mxu0 0
    %629 = vmatpush2.bf16.msra.mxu0 0
    %630 = vmatprep.subr.bf16.mxu0 0
    %631 = vmatpush2.bf16.msra.mxu0 0
    %632 = vmatprep.subr.bf16.mxu0 0
    %633 = vmatpush2.bf16.msra.mxu0 0
    %634 = vmatprep.mubr.bf16.mxu0 0
    %635 = vmatmul.mubr.bf16.gmra.mxu0 %v600
    %v636 = vpop.f32.mrf.mxu0
    %v637 = vadd.f32 0.0, %v636
    %v638 = vpop.f32.mrf.mxu0
    %v639 = vpop.f32.mrf.mxu0
    %v640 = vpop.f32.mrf.mxu0
    %641 = vdwg.mxu0
    %v643 = vrot.slane %v637, 4
    %v645 = vadd.f32 %v424, %v643
    %v646 = vxor.u32 %v645, 2147483648
    %v647 = vmul.f32 %v646, 1.442695
    %v648 = vpow.pop %v647
    %v649 = vadd.f32 %v648, 1.0
    %v650 = vrcp.pop %v649
    %v651 = vmul.f32 1.0, %v650
    %v652 = vtanh.pop %v645
    %v654 = vrot.slane %v587, 6
    %v656 = vmul.f32 %v651, %v654
    %658 = vrot.lane.b32.xlu0 %v652, 64
    %v659 = vpop.permute.xlu0 %658
    %v661 = vmul.f32 %v651, %v659
    %663 = vrot.lane.b32.xlu0 %v661, 32
    %v664 = vpop.permute.xlu0 %663
    %v666 = vadd.f32 %v656, %v664
    %v667 = vtanh.pop %v666
    %669 = vrot.lane.b32.xlu0 %v667, 64
    %v670 = vpop.permute.xlu0 %669
    %v672 = vmul.f32 %v651, %v670
    %v673 = vpack.c.bf16 %v672, %v672
    %v675 = vrot.slane %v673, 2
    %676 = vrot.lane.b32.xlu0 %v675, 32
    %v677 = vpop.permute.xlu0 %676
    %v679 = vsel %vm447, %v677, 0
    %681 = vmatprep.subr.bf16.mxu0 0
    %682 = vmatpush1.bf16.msra.mxu0 0
    %683 = vmatprep.subr.bf16.mxu0 0
    %684 = vmatpush1.bf16.msra.mxu0 0
    %685 = vmatprep.subr.bf16.mxu0 0
    %686 = vmatpush1.bf16.msra.mxu0 0
    %687 = vmatprep.subr.bf16.mxu0 0
    %688 = vmatpush1.bf16.msra.mxu0 0
    %689 = vmatprep.subr.bf16.mxu0 0
    %690 = vmatpush1.bf16.msra.mxu0 0
    %691 = vmatprep.subr.bf16.mxu0 0
    %692 = vmatpush1.bf16.msra.mxu0 0
    %693 = vmatprep.subr.bf16.mxu0 0
    %694 = vmatpush1.bf16.msra.mxu0 %v444
    %695 = vmatprep.subr.bf16.mxu0 0
    %696 = vmatpush1.bf16.msra.mxu0 %v443
    %697 = vmatprep.subr.bf16.mxu0 0
    %698 = vmatpush2.bf16.msra.mxu0 0
    %699 = vmatprep.subr.bf16.mxu0 0
    %700 = vmatpush2.bf16.msra.mxu0 0
    %701 = vmatprep.subr.bf16.mxu0 0
    %702 = vmatpush2.bf16.msra.mxu0 0
    %703 = vmatprep.subr.bf16.mxu0 0
    %704 = vmatpush2.bf16.msra.mxu0 0
    %705 = vmatprep.subr.bf16.mxu0 0
    %706 = vmatpush2.bf16.msra.mxu0 0
    %707 = vmatprep.subr.bf16.mxu0 0
    %708 = vmatpush2.bf16.msra.mxu0 0
    %709 = vmatprep.subr.bf16.mxu0 0
    %710 = vmatpush2.bf16.msra.mxu0 0
    %711 = vmatprep.subr.bf16.mxu0 0
    %712 = vmatpush2.bf16.msra.mxu0 0
    %713 = vmatprep.mubr.bf16.mxu0 0
    %714 = vmatmul.mubr.bf16.gmra.mxu0 %v679
    %v715 = vpop.f32.mrf.mxu0
    %v716 = vadd.f32 0.0, %v715
    %v717 = vpop.f32.mrf.mxu0
    %v718 = vpop.f32.mrf.mxu0
    %v719 = vpop.f32.mrf.mxu0
    %720 = vdwg.mxu0
    %v722 = vrot.slane %v716, 2
    %v724 = vadd.f32 %v424, %v722
    %v725 = vxor.u32 %v724, 2147483648
    %v726 = vmul.f32 %v725, 1.442695
    %v727 = vpow.pop %v726
    %v728 = vadd.f32 %v727, 1.0
    %v729 = vrcp.pop %v728
    %v730 = vmul.f32 1.0, %v729
    %v731 = vtanh.pop %v724
    %v733 = vrot.slane %v666, 6
    %v735 = vmul.f32 %v730, %v733
    %737 = vrot.lane.b32.xlu0 %v731, 64
    %v738 = vpop.permute.xlu0 %737
    %v740 = vmul.f32 %v730, %v738
    %742 = vrot.lane.b32.xlu0 %v740, 32
    %v743 = vpop.permute.xlu0 %742
    %v745 = vadd.f32 %v735, %v743
    %v746 = vtanh.pop %v745
    %748 = vrot.lane.b32.xlu0 %v746, 64
    %v749 = vpop.permute.xlu0 %748
    %v751 = vmul.f32 %v730, %v749
    %v752 = vpack.c.bf16 %v751, %v751
    %v754 = vrot.slane %v752, 3
    %755 = vrot.lane.b32.xlu0 %v754, 32
    %v756 = vpop.permute.xlu0 %755
    %v758 = vsel %vm447, %v756, 0
    %760 = vmatprep.subr.bf16.mxu0 0
    %761 = vmatpush1.bf16.msra.mxu0 0
    %762 = vmatprep.subr.bf16.mxu0 0
    %763 = vmatpush1.bf16.msra.mxu0 0
    %764 = vmatprep.subr.bf16.mxu0 0
    %765 = vmatpush1.bf16.msra.mxu0 0
    %766 = vmatprep.subr.bf16.mxu0 0
    %767 = vmatpush1.bf16.msra.mxu0 0
    %768 = vmatprep.subr.bf16.mxu0 0
    %769 = vmatpush1.bf16.msra.mxu0 0
    %770 = vmatprep.subr.bf16.mxu0 0
    %771 = vmatpush1.bf16.msra.mxu0 0
    %772 = vmatprep.subr.bf16.mxu0 0
    %773 = vmatpush1.bf16.msra.mxu0 %v444
    %774 = vmatprep.subr.bf16.mxu0 0
    %775 = vmatpush1.bf16.msra.mxu0 %v443
    %776 = vmatprep.subr.bf16.mxu0 0
    %777 = vmatpush2.bf16.msra.mxu0 0
    %778 = vmatprep.subr.bf16.mxu0 0
    %779 = vmatpush2.bf16.msra.mxu0 0
    %780 = vmatprep.subr.bf16.mxu0 0
    %781 = vmatpush2.bf16.msra.mxu0 0
    %782 = vmatprep.subr.bf16.mxu0 0
    %783 = vmatpush2.bf16.msra.mxu0 0
    %784 = vmatprep.subr.bf16.mxu0 0
    %785 = vmatpush2.bf16.msra.mxu0 0
    %786 = vmatprep.subr.bf16.mxu0 0
    %787 = vmatpush2.bf16.msra.mxu0 0
    %788 = vmatprep.subr.bf16.mxu0 0
    %789 = vmatpush2.bf16.msra.mxu0 0
    %790 = vmatprep.subr.bf16.mxu0 0
    %791 = vmatpush2.bf16.msra.mxu0 0
    %792 = vmatprep.mubr.bf16.mxu0 0
    %793 = vmatmul.mubr.bf16.gmra.mxu0 %v758
    %v794 = vpop.f32.mrf.mxu0
    %v795 = vadd.f32 0.0, %v794
    %v796 = vpop.f32.mrf.mxu0
    %v797 = vpop.f32.mrf.mxu0
    %v798 = vpop.f32.mrf.mxu0
    %799 = vdwg.mxu0
    %v800 = vadd.f32 %v427, %v795
    %v801 = vxor.u32 %v800, 2147483648
    %v802 = vmul.f32 %v801, 1.442695
    %v803 = vpow.pop %v802
    %v804 = vadd.f32 %v803, 1.0
    %v805 = vrcp.pop %v804
    %v806 = vmul.f32 1.0, %v805
    %v807 = vtanh.pop %v800
    %v809 = vrot.slane %v745, 6
    %v811 = vmul.f32 %v806, %v809
    %813 = vrot.lane.b32.xlu0 %v807, 64
    %v814 = vpop.permute.xlu0 %813
    %v816 = vmul.f32 %v806, %v814
    %818 = vrot.lane.b32.xlu0 %v816, 32
    %v819 = vpop.permute.xlu0 %818
    %v821 = vadd.f32 %v811, %v819
    %v822 = vtanh.pop %v821
    %824 = vrot.lane.b32.xlu0 %v822, 64
    %v825 = vpop.permute.xlu0 %824
    %v827 = vmul.f32 %v806, %v825
    %v828 = vpack.c.bf16 %v827, %v827
    %830 = vrot.lane.b32.xlu0 %v828, 32
    %v831 = vpop.permute.xlu0 %830
    %v833 = vsel %vm447, %v831, 0
    %835 = vmatprep.subr.bf16.mxu0 0
    %836 = vmatpush1.bf16.msra.mxu0 0
    %837 = vmatprep.subr.bf16.mxu0 0
    %838 = vmatpush1.bf16.msra.mxu0 0
    %839 = vmatprep.subr.bf16.mxu0 0
    %840 = vmatpush1.bf16.msra.mxu0 0
    %841 = vmatprep.subr.bf16.mxu0 0
    %842 = vmatpush1.bf16.msra.mxu0 0
    %843 = vmatprep.subr.bf16.mxu0 0
    %844 = vmatpush1.bf16.msra.mxu0 0
    %845 = vmatprep.subr.bf16.mxu0 0
    %846 = vmatpush1.bf16.msra.mxu0 0
    %847 = vmatprep.subr.bf16.mxu0 0
    %848 = vmatpush1.bf16.msra.mxu0 %v444
    %849 = vmatprep.subr.bf16.mxu0 0
    %850 = vmatpush1.bf16.msra.mxu0 %v443
    %851 = vmatprep.subr.bf16.mxu0 0
    %852 = vmatpush2.bf16.msra.mxu0 0
    %853 = vmatprep.subr.bf16.mxu0 0
    %854 = vmatpush2.bf16.msra.mxu0 0
    %855 = vmatprep.subr.bf16.mxu0 0
    %856 = vmatpush2.bf16.msra.mxu0 0
    %857 = vmatprep.subr.bf16.mxu0 0
    %858 = vmatpush2.bf16.msra.mxu0 0
    %859 = vmatprep.subr.bf16.mxu0 0
    %860 = vmatpush2.bf16.msra.mxu0 0
    %861 = vmatprep.subr.bf16.mxu0 0
    %862 = vmatpush2.bf16.msra.mxu0 0
    %863 = vmatprep.subr.bf16.mxu0 0
    %864 = vmatpush2.bf16.msra.mxu0 0
    %865 = vmatprep.subr.bf16.mxu0 0
    %866 = vmatpush2.bf16.msra.mxu0 0
    %867 = vmatprep.mubr.bf16.mxu0 0
    %868 = vmatmul.mubr.bf16.gmra.mxu0 %v833
    %v869 = vpop.f32.mrf.mxu0
    %v870 = vadd.f32 0.0, %v869
    %v871 = vpop.f32.mrf.mxu0
    %v872 = vpop.f32.mrf.mxu0
    %v873 = vpop.f32.mrf.mxu0
    %874 = vdwg.mxu0
    %v876 = vrot.slane %v870, 6
    %v878 = vadd.f32 %v427, %v876
    %v879 = vxor.u32 %v878, 2147483648
    %v880 = vmul.f32 %v879, 1.442695
    %v881 = vpow.pop %v880
    %v882 = vadd.f32 %v881, 1.0
    %v883 = vrcp.pop %v882
    %v884 = vmul.f32 1.0, %v883
    %v885 = vtanh.pop %v878
    %v887 = vrot.slane %v821, 6
    %v889 = vmul.f32 %v884, %v887
    %891 = vrot.lane.b32.xlu0 %v885, 64
    %v892 = vpop.permute.xlu0 %891
    %v894 = vmul.f32 %v884, %v892
    %896 = vrot.lane.b32.xlu0 %v894, 32
    %v897 = vpop.permute.xlu0 %896
    %v899 = vadd.f32 %v889, %v897
    %v900 = vtanh.pop %v899
    %902 = vrot.lane.b32.xlu0 %v900, 64
    %v903 = vpop.permute.xlu0 %902
    %v905 = vmul.f32 %v884, %v903
    %v906 = vpack.c.bf16 %v905, %v905
    %v908 = vrot.slane %v906, 1
    %909 = vrot.lane.b32.xlu0 %v908, 32
    %v910 = vpop.permute.xlu0 %909
    %v912 = vsel %vm447, %v910, 0
    %914 = vmatprep.subr.bf16.mxu0 0
    %915 = vmatpush1.bf16.msra.mxu0 0
    %916 = vmatprep.subr.bf16.mxu0 0
    %917 = vmatpush1.bf16.msra.mxu0 0
    %918 = vmatprep.subr.bf16.mxu0 0
    %919 = vmatpush1.bf16.msra.mxu0 0
    %920 = vmatprep.subr.bf16.mxu0 0
    %921 = vmatpush1.bf16.msra.mxu0 0
    %922 = vmatprep.subr.bf16.mxu0 0
    %923 = vmatpush1.bf16.msra.mxu0 0
    %924 = vmatprep.subr.bf16.mxu0 0
    %925 = vmatpush1.bf16.msra.mxu0 0
    %926 = vmatprep.subr.bf16.mxu0 0
    %927 = vmatpush1.bf16.msra.mxu0 %v444
    %928 = vmatprep.subr.bf16.mxu0 0
    %929 = vmatpush1.bf16.msra.mxu0 %v443
    %930 = vmatprep.subr.bf16.mxu0 0
    %931 = vmatpush2.bf16.msra.mxu0 0
    %932 = vmatprep.subr.bf16.mxu0 0
    %933 = vmatpush2.bf16.msra.mxu0 0
    %934 = vmatprep.subr.bf16.mxu0 0
    %935 = vmatpush2.bf16.msra.mxu0 0
    %936 = vmatprep.subr.bf16.mxu0 0
    %937 = vmatpush2.bf16.msra.mxu0 0
    %938 = vmatprep.subr.bf16.mxu0 0
    %939 = vmatpush2.bf16.msra.mxu0 0
    %940 = vmatprep.subr.bf16.mxu0 0
    %941 = vmatpush2.bf16.msra.mxu0 0
    %942 = vmatprep.subr.bf16.mxu0 0
    %943 = vmatpush2.bf16.msra.mxu0 0
    %944 = vmatprep.subr.bf16.mxu0 0
    %945 = vmatpush2.bf16.msra.mxu0 0
    %946 = vmatprep.mubr.bf16.mxu0 0
    %947 = vmatmul.mubr.bf16.gmra.mxu0 %v912
    %v948 = vpop.f32.mrf.mxu0
    %v949 = vadd.f32 0.0, %v948
    %v950 = vpop.f32.mrf.mxu0
    %v951 = vpop.f32.mrf.mxu0
    %v952 = vpop.f32.mrf.mxu0
    %953 = vdwg.mxu0
    %v955 = vrot.slane %v949, 4
    %v957 = vadd.f32 %v427, %v955
    %v958 = vxor.u32 %v957, 2147483648
    %v959 = vmul.f32 %v958, 1.442695
    %v960 = vpow.pop %v959
    %v961 = vadd.f32 %v960, 1.0
    %v962 = vrcp.pop %v961
    %v963 = vmul.f32 1.0, %v962
    %v964 = vtanh.pop %v957
    %v966 = vrot.slane %v899, 6
    %v968 = vmul.f32 %v963, %v966
    %970 = vrot.lane.b32.xlu0 %v964, 64
    %v971 = vpop.permute.xlu0 %970
    %v973 = vmul.f32 %v963, %v971
    %975 = vrot.lane.b32.xlu0 %v973, 32
    %v976 = vpop.permute.xlu0 %975
    %v978 = vadd.f32 %v968, %v976
    %v979 = vtanh.pop %v978
    %981 = vrot.lane.b32.xlu0 %v979, 64
    %v982 = vpop.permute.xlu0 %981
    %v984 = vmul.f32 %v963, %v982
    %v985 = vpack.c.bf16 %v984, %v984
    %v987 = vrot.slane %v985, 2
    %988 = vrot.lane.b32.xlu0 %v987, 32
    %v989 = vpop.permute.xlu0 %988
    %v991 = vsel %vm447, %v989, 0
    %993 = vmatprep.subr.bf16.mxu0 0
    %994 = vmatpush1.bf16.msra.mxu0 0
    %995 = vmatprep.subr.bf16.mxu0 0
    %996 = vmatpush1.bf16.msra.mxu0 0
    %997 = vmatprep.subr.bf16.mxu0 0
    %998 = vmatpush1.bf16.msra.mxu0 0
    %999 = vmatprep.subr.bf16.mxu0 0
    %1000 = vmatpush1.bf16.msra.mxu0 0
    %1001 = vmatprep.subr.bf16.mxu0 0
    %1002 = vmatpush1.bf16.msra.mxu0 0
    %1003 = vmatprep.subr.bf16.mxu0 0
    %1004 = vmatpush1.bf16.msra.mxu0 0
    %1005 = vmatprep.subr.bf16.mxu0 0
    %1006 = vmatpush1.bf16.msra.mxu0 %v444
    %1007 = vmatprep.subr.bf16.mxu0 0
    %1008 = vmatpush1.bf16.msra.mxu0 %v443
    %1009 = vmatprep.subr.bf16.mxu0 0
    %1010 = vmatpush2.bf16.msra.mxu0 0
    %1011 = vmatprep.subr.bf16.mxu0 0
    %1012 = vmatpush2.bf16.msra.mxu0 0
    %1013 = vmatprep.subr.bf16.mxu0 0
    %1014 = vmatpush2.bf16.msra.mxu0 0
    %1015 = vmatprep.subr.bf16.mxu0 0
    %1016 = vmatpush2.bf16.msra.mxu0 0
    %1017 = vmatprep.subr.bf16.mxu0 0
    %1018 = vmatpush2.bf16.msra.mxu0 0
    %1019 = vmatprep.subr.bf16.mxu0 0
    %1020 = vmatpush2.bf16.msra.mxu0 0
    %1021 = vmatprep.subr.bf16.mxu0 0
    %1022 = vmatpush2.bf16.msra.mxu0 0
    %1023 = vmatprep.subr.bf16.mxu0 0
    %1024 = vmatpush2.bf16.msra.mxu0 0
    %1025 = vmatprep.mubr.bf16.mxu0 0
    %1026 = vmatmul.mubr.bf16.gmra.mxu0 %v991
    %v1027 = vpop.f32.mrf.mxu0
    %v1028 = vadd.f32 0.0, %v1027
    %v1029 = vpop.f32.mrf.mxu0
    %v1030 = vpop.f32.mrf.mxu0
    %v1031 = vpop.f32.mrf.mxu0
    %1032 = vdwg.mxu0
    %v1034 = vrot.slane %v1028, 2
    %v1036 = vadd.f32 %v427, %v1034
    %v1037 = vxor.u32 %v1036, 2147483648
    %v1038 = vmul.f32 %v1037, 1.442695
    %v1039 = vpow.pop %v1038
    %v1040 = vadd.f32 %v1039, 1.0
    %v1041 = vrcp.pop %v1040
    %v1042 = vmul.f32 1.0, %v1041
    %v1043 = vtanh.pop %v1036
    %v1045 = vrot.slane %v978, 6
    %v1047 = vmul.f32 %v1042, %v1045
    %1049 = vrot.lane.b32.xlu0 %v1043, 64
    %v1050 = vpop.permute.xlu0 %1049
    %v1052 = vmul.f32 %v1042, %v1050
    %1054 = vrot.lane.b32.xlu0 %v1052, 32
    %v1055 = vpop.permute.xlu0 %1054
    %v1057 = vadd.f32 %v1047, %v1055
    %v1058 = vtanh.pop %v1057
    %1060 = vrot.lane.b32.xlu0 %v1058, 64
    %v1061 = vpop.permute.xlu0 %1060
    %v1063 = vmul.f32 %v1042, %v1061
    %v1064 = vxor.u32 %v429, 2147483648
    %v1065 = vmul.f32 %v1064, 1.442695
    %v1066 = vpow.pop %v1065
    %v1067 = vadd.f32 %v1066, 1.0
    %v1068 = vrcp.pop %v1067
    %v1069 = vmul.f32 1.0, %v1068
    %v1070 = vtanh.pop %v429
    %v1071 = vmul.f32 %v1069, 0.0
    %1073 = vrot.lane.b32.xlu0 %v1070, 64
    %v1074 = vpop.permute.xlu0 %1073
    %v1076 = vmul.f32 %v1069, %v1074
    %1078 = vrot.lane.b32.xlu0 %v1076, 32
    %v1079 = vpop.permute.xlu0 %1078
    %v1081 = vadd.f32 %v1071, %v1079
    %v1082 = vtanh.pop %v1081
    %1084 = vrot.lane.b32.xlu0 %v1082, 64
    %v1085 = vpop.permute.xlu0 %1084
    %v1087 = vmul.f32 %v1069, %v1085
    %v1088 = vld [vmem:[#allocation2 + $0x60] sm:$0xf]
    %v1089 = vld [vmem:[#allocation2 + $0x68] sm:$0xf]
    %v1090 = vld [vmem:[#allocation2 + $0x70] sm:$0xf]
    %v1091 = vld [vmem:[#allocation2 + $0x78] sm:$0xf]
    %v1092 = vpack.c.bf16 %v1063, %v1063
    %v1093 = vld [vmem:[#allocation2 + $0x80] sm:$0xf]
    %v1094 = vld [vmem:[#allocation2 + $0x88] sm:$0xf]
    %v1095 = vld [vmem:[#allocation2 + $0x90] sm:$0xf]
    %v1096 = vld [vmem:[#allocation2 + $0x98] sm:$0xf]
    %v1097 = vpack.c.bf16 %v1087, %v1087
    %v1099 = vrot.slane %v1097, 3
    %1100 = vrot.lane.b32.xlu0 %v1099, 32
    %v1101 = vpop.permute.xlu0 %1100
    %v1106 = vunpack.c.l.b16 %v1093
    %v1107 = vunpack.c.l.b16 %v1094
    %v1108 = vunpack.c.l.b16 %v1095
    %v1109 = vunpack.c.l.b16 %v1096
    %v1110 = vpack.c.b16 %v1107, %v1106
    %v1111 = vpack.c.b16 %v1109, %v1108
    %v1115 = vsel %vm447, %v1101, 0
    %1117 = vmatprep.subr.bf16.mxu0 0
    %1118 = vmatpush1.bf16.msra.mxu0 0
    %1119 = vmatprep.subr.bf16.mxu0 0
    %1120 = vmatpush1.bf16.msra.mxu0 0
    %1121 = vmatprep.subr.bf16.mxu0 0
    %1122 = vmatpush1.bf16.msra.mxu0 0
    %1123 = vmatprep.subr.bf16.mxu0 0
    %1124 = vmatpush1.bf16.msra.mxu0 0
    %1125 = vmatprep.subr.bf16.mxu0 0
    %1126 = vmatpush1.bf16.msra.mxu0 0
    %1127 = vmatprep.subr.bf16.mxu0 0
    %1128 = vmatpush1.bf16.msra.mxu0 0
    %1129 = vmatprep.subr.bf16.mxu0 0
    %1130 = vmatpush1.bf16.msra.mxu0 %v1111
    %1131 = vmatprep.subr.bf16.mxu0 0
    %1132 = vmatpush1.bf16.msra.mxu0 %v1110
    %1133 = vmatprep.subr.bf16.mxu0 0
    %1134 = vmatpush2.bf16.msra.mxu0 0
    %1135 = vmatprep.subr.bf16.mxu0 0
    %1136 = vmatpush2.bf16.msra.mxu0 0
    %1137 = vmatprep.subr.bf16.mxu0 0
    %1138 = vmatpush2.bf16.msra.mxu0 0
    %1139 = vmatprep.subr.bf16.mxu0 0
    %1140 = vmatpush2.bf16.msra.mxu0 0
    %1141 = vmatprep.subr.bf16.mxu0 0
    %1142 = vmatpush2.bf16.msra.mxu0 0
    %1143 = vmatprep.subr.bf16.mxu0 0
    %1144 = vmatpush2.bf16.msra.mxu0 0
    %1145 = vmatprep.subr.bf16.mxu0 0
    %1146 = vmatpush2.bf16.msra.mxu0 0
    %1147 = vmatprep.subr.bf16.mxu0 0
    %1148 = vmatpush2.bf16.msra.mxu0 0
    %1149 = vmatprep.mubr.bf16.mxu0 0
    %1150 = vmatmul.mubr.bf16.gmra.mxu0 %v1115
    %v1151 = vpop.f32.mrf.mxu0
    %v1152 = vadd.f32 0.0, %v1151
    %v1153 = vpop.f32.mrf.mxu0
    %v1154 = vpop.f32.mrf.mxu0
    %v1155 = vpop.f32.mrf.mxu0
    %1156 = vdwg.mxu0
    %v1158 = vrot.slane %v1092, 3
    %1159 = vrot.lane.b32.xlu0 %v1158, 32
    %v1160 = vpop.permute.xlu0 %1159
    %v1165 = vunpack.c.l.b16 %v1088
    %v1166 = vunpack.c.l.b16 %v1089
    %v1167 = vunpack.c.l.b16 %v1090
    %v1168 = vunpack.c.l.b16 %v1091
    %v1169 = vpack.c.b16 %v1166, %v1165
    %v1170 = vpack.c.b16 %v1168, %v1167
    %v1174 = vsel %vm447, %v1160, 0
    %1176 = vmatprep.subr.bf16.mxu0 0
    %1177 = vmatpush1.bf16.msra.mxu0 0
    %1178 = vmatprep.subr.bf16.mxu0 0
    %1179 = vmatpush1.bf16.msra.mxu0 0
    %1180 = vmatprep.subr.bf16.mxu0 0
    %1181 = vmatpush1.bf16.msra.mxu0 0
    %1182 = vmatprep.subr.bf16.mxu0 0
    %1183 = vmatpush1.bf16.msra.mxu0 0
    %1184 = vmatprep.subr.bf16.mxu0 0
    %1185 = vmatpush1.bf16.msra.mxu0 0
    %1186 = vmatprep.subr.bf16.mxu0 0
    %1187 = vmatpush1.bf16.msra.mxu0 0
    %1188 = vmatprep.subr.bf16.mxu0 0
    %1189 = vmatpush1.bf16.msra.mxu0 %v1170
    %1190 = vmatprep.subr.bf16.mxu0 0
    %1191 = vmatpush1.bf16.msra.mxu0 %v1169
    %1192 = vmatprep.subr.bf16.mxu0 0
    %1193 = vmatpush2.bf16.msra.mxu0 0
    %1194 = vmatprep.subr.bf16.mxu0 0
    %1195 = vmatpush2.bf16.msra.mxu0 0
    %1196 = vmatprep.subr.bf16.mxu0 0
    %1197 = vmatpush2.bf16.msra.mxu0 0
    %1198 = vmatprep.subr.bf16.mxu0 0
    %1199 = vmatpush2.bf16.msra.mxu0 0
    %1200 = vmatprep.subr.bf16.mxu0 0
    %1201 = vmatpush2.bf16.msra.mxu0 0
    %1202 = vmatprep.subr.bf16.mxu0 0
    %1203 = vmatpush2.bf16.msra.mxu0 0
    %1204 = vmatprep.subr.bf16.mxu0 0
    %1205 = vmatpush2.bf16.msra.mxu0 0
    %1206 = vmatprep.subr.bf16.mxu0 0
    %1207 = vmatpush2.bf16.msra.mxu0 0
    %1208 = vmatprep.mubr.bf16.mxu0 0
    %1209 = vmatmul.mubr.bf16.gmra.mxu0 %v1174
    %v1210 = vpop.f32.mrf.mxu0
    %v1211 = vadd.f32 %v1152, %v1210
    %v1212 = vpop.f32.mrf.mxu0
    %v1213 = vpop.f32.mrf.mxu0
    %v1214 = vpop.f32.mrf.mxu0
    %1215 = vdwg.mxu0
    %v1216 = vld [vmem:[#allocation5 + $0x40] ss:$0 sm:$0xff]
    %v1217 = vadd.f32 %v1211, %v1216
    %v1218 = vld [vmem:[#allocation2 + $0xa0] sm:$0xf]
    %v1219 = vpack.c.bf16 %v353, %v353
    %v1220 = vld [vmem:[#allocation2 + $0xb0] sm:$0x1]
    %v1221 = vpack.c.bf16 %v1217, %v1217
    %vm1222 = vcmask 7168
    %v1224 = vsel %vm1222, %v1221, 0
    %vm1226 = vcmask 1040384
    %v1227 = vsel 0, 4294967295, 65535
    %v1228 = vsel %vm1226, %v1227, 0
    %v1230 = vand.u32 %v1220, %v1228
    %1232 = vmatprep.subr.bf16.mxu0 0
    %1233 = vmatpush1.bf16.msra.mxu0 0
    %1234 = vmatprep.subr.bf16.mxu0 0
    %1235 = vmatpush1.bf16.msra.mxu0 0
    %1236 = vmatprep.subr.bf16.mxu0 0
    %1237 = vmatpush1.bf16.msra.mxu0 0
    %1238 = vmatprep.subr.bf16.mxu0 0
    %1239 = vmatpush1.bf16.msra.mxu0 0
    %1240 = vmatprep.subr.bf16.mxu0 0
    %1241 = vmatpush1.bf16.msra.mxu0 0
    %1242 = vmatprep.subr.bf16.mxu0 0
    %1243 = vmatpush1.bf16.msra.mxu0 0
    %1244 = vmatprep.subr.bf16.mxu0 0
    %1245 = vmatpush1.bf16.msra.mxu0 0
    %1246 = vmatprep.subr.bf16.mxu0 0
    %1247 = vmatpush1.bf16.msra.mxu0 %v1230
    %1248 = vmatprep.subr.bf16.mxu0 0
    %1249 = vmatpush2.bf16.msra.mxu0 0
    %1250 = vmatprep.subr.bf16.mxu0 0
    %1251 = vmatpush2.bf16.msra.mxu0 0
    %1252 = vmatprep.subr.bf16.mxu0 0
    %1253 = vmatpush2.bf16.msra.mxu0 0
    %1254 = vmatprep.subr.bf16.mxu0 0
    %1255 = vmatpush2.bf16.msra.mxu0 0
    %1256 = vmatprep.subr.bf16.mxu0 0
    %1257 = vmatpush2.bf16.msra.mxu0 0
    %1258 = vmatprep.subr.bf16.mxu0 0
    %1259 = vmatpush2.bf16.msra.mxu0 0
    %1260 = vmatprep.subr.bf16.mxu0 0
    %1261 = vmatpush2.bf16.msra.mxu0 0
    %1262 = vmatprep.subr.bf16.mxu0 0
    %1263 = vmatpush2.bf16.msra.mxu0 0
    %1264 = vmatprep.mubr.bf16.mxu0 0
    %1265 = vmatmul.mubr.bf16.gmra.mxu0 %v1224
    %v1266 = vpop.f32.mrf.mxu0
    %v1267 = vadd.f32 0.0, %v1266
    %v1268 = vpop.f32.mrf.mxu0
    %v1269 = vpop.f32.mrf.mxu0
    %v1270 = vpop.f32.mrf.mxu0
    %1271 = vdwg.mxu0
    %v1273 = vsel %vm59, %v1219, 0
    %v1276 = vsel %vm63, %v1218, 0
    %1278 = vmatprep.subr.bf16.mxu0 0
    %1279 = vmatpush1.bf16.msra.mxu0 0
    %1280 = vmatprep.subr.bf16.mxu0 0
    %1281 = vmatpush1.bf16.msra.mxu0 0
    %1282 = vmatprep.subr.bf16.mxu0 0
    %1283 = vmatpush1.bf16.msra.mxu0 0
    %1284 = vmatprep.subr.bf16.mxu0 0
    %1285 = vmatpush1.bf16.msra.mxu0 0
    %1286 = vmatprep.subr.bf16.mxu0 0
    %1287 = vmatpush1.bf16.msra.mxu0 0
    %1288 = vmatprep.subr.bf16.mxu0 0
    %1289 = vmatpush1.bf16.msra.mxu0 0
    %1290 = vmatprep.subr.bf16.mxu0 0
    %1291 = vmatpush1.bf16.msra.mxu0 0
    %1292 = vmatprep.subr.bf16.mxu0 0
    %1293 = vmatpush1.bf16.msra.mxu0 %v1276
    %1294 = vmatprep.subr.bf16.mxu0 0
    %1295 = vmatpush2.bf16.msra.mxu0 0
    %1296 = vmatprep.subr.bf16.mxu0 0
    %1297 = vmatpush2.bf16.msra.mxu0 0
    %1298 = vmatprep.subr.bf16.mxu0 0
    %1299 = vmatpush2.bf16.msra.mxu0 0
    %1300 = vmatprep.subr.bf16.mxu0 0
    %1301 = vmatpush2.bf16.msra.mxu0 0
    %1302 = vmatprep.subr.bf16.mxu0 0
    %1303 = vmatpush2.bf16.msra.mxu0 0
    %1304 = vmatprep.subr.bf16.mxu0 0
    %1305 = vmatpush2.bf16.msra.mxu0 0
    %1306 = vmatprep.subr.bf16.mxu0 0
    %1307 = vmatpush2.bf16.msra.mxu0 0
    %1308 = vmatprep.subr.bf16.mxu0 0
    %1309 = vmatpush2.bf16.msra.mxu0 0
    %1310 = vmatprep.mubr.bf16.mxu0 0
    %1311 = vmatmul.mubr.bf16.gmra.mxu0 %v1273
    %v1312 = vpop.f32.mrf.mxu0
    %v1313 = vadd.f32 %v1267, %v1312
    %v1314 = vpop.f32.mrf.mxu0
    %v1315 = vpop.f32.mrf.mxu0
    %v1316 = vpop.f32.mrf.mxu0
    %1317 = vdwg.mxu0
    %v1318 = vld [vmem:[#allocation5 + $0x50] ss:$0 sm:$0xff]
    %v1319 = vadd.f32 %v1313, %v1318
    %v1320 = vmax.f32 %v1319, 0.0
    %v1321 = vld [vmem:[#allocation2 + $0xc0] sm:$0xf]
    %v1322 = vld [vmem:[#allocation2 + $0xc8] sm:$0xf]
    %v1323 = vld [vmem:[#allocation2 + $0xd0] sm:$0xf]
    %v1324 = vld [vmem:[#allocation2 + $0xd8] sm:$0xf]
    %v1325 = vld [vmem:[#allocation2 + $0xe0] sm:$0xf]
    %v1326 = vld [vmem:[#allocation2 + $0xe8] sm:$0xf]
    %v1327 = vld [vmem:[#allocation2 + $0xf0] sm:$0xf]
    %v1328 = vld [vmem:[#allocation2 + $0xf8] sm:$0xf]
    %v1329 = vld [vmem:[#allocation2 + $0x100] sm:$0xf]
    %v1330 = vld [vmem:[#allocation2 + $0x108] sm:$0xf]
    %v1331 = vld [vmem:[#allocation2 + $0x110] sm:$0xf]
    %v1332 = vld [vmem:[#allocation2 + $0x118] sm:$0xf]
    %v1333 = vld [vmem:[#allocation2 + $0x120] sm:$0xf]
    %v1334 = vld [vmem:[#allocation2 + $0x128] sm:$0xf]
    %v1335 = vld [vmem:[#allocation2 + $0x130] sm:$0xf]
    %v1336 = vld [vmem:[#allocation2 + $0x138] sm:$0xf]
    %v1337 = vpack.c.bf16 %v1320, %v1320
    %v1338 = vld [vmem:[#allocation5 + $0x60] ss:$0 sm:$0xff]
    %v1355 = vunpack.c.l.b16 %v1321
    %v1356 = vunpack.c.l.b16 %v1322
    %v1357 = vunpack.c.l.b16 %v1323
    %v1358 = vunpack.c.l.b16 %v1324
    %v1359 = vunpack.c.l.b16 %v1325
    %v1360 = vunpack.c.l.b16 %v1326
    %v1361 = vunpack.c.l.b16 %v1327
    %v1362 = vunpack.c.l.b16 %v1328
    %v1363 = vunpack.c.l.b16 %v1329
    %v1364 = vunpack.c.l.b16 %v1330
    %v1365 = vunpack.c.l.b16 %v1331
    %v1366 = vunpack.c.l.b16 %v1332
    %v1367 = vunpack.c.l.b16 %v1333
    %v1368 = vunpack.c.l.b16 %v1334
    %v1369 = vunpack.c.l.b16 %v1335
    %v1370 = vunpack.c.l.b16 %v1336
    %v1371 = vpack.c.b16 %v1356, %v1355
    %v1372 = vpack.c.b16 %v1358, %v1357
    %v1373 = vpack.c.b16 %v1360, %v1359
    %v1374 = vpack.c.b16 %v1362, %v1361
    %v1375 = vpack.c.b16 %v1364, %v1363
    %v1376 = vpack.c.b16 %v1366, %v1365
    %v1377 = vpack.c.b16 %v1368, %v1367
    %v1378 = vpack.c.b16 %v1370, %v1369
    %1387 = vmatprep.subr.bf16.mxu0 0
    %1388 = vmatpush1.bf16.msra.mxu0 %v1378
    %1389 = vmatprep.subr.bf16.mxu0 0
    %1390 = vmatpush1.bf16.msra.mxu0 %v1377
    %1391 = vmatprep.subr.bf16.mxu0 0
    %1392 = vmatpush1.bf16.msra.mxu0 %v1376
    %1393 = vmatprep.subr.bf16.mxu0 0
    %1394 = vmatpush1.bf16.msra.mxu0 %v1375
    %1395 = vmatprep.subr.bf16.mxu0 0
    %1396 = vmatpush1.bf16.msra.mxu0 %v1374
    %1397 = vmatprep.subr.bf16.mxu0 0
    %1398 = vmatpush1.bf16.msra.mxu0 %v1373
    %1399 = vmatprep.subr.bf16.mxu0 0
    %1400 = vmatpush1.bf16.msra.mxu0 %v1372
    %1401 = vmatprep.subr.bf16.mxu0 0
    %1402 = vmatpush1.bf16.msra.mxu0 %v1371
    %1403 = vmatprep.subr.bf16.mxu0 0
    %1404 = vmatpush2.bf16.msra.mxu0 0
    %1405 = vmatprep.subr.bf16.mxu0 0
    %1406 = vmatpush2.bf16.msra.mxu0 0
    %1407 = vmatprep.subr.bf16.mxu0 0
    %1408 = vmatpush2.bf16.msra.mxu0 0
    %1409 = vmatprep.subr.bf16.mxu0 0
    %1410 = vmatpush2.bf16.msra.mxu0 0
    %1411 = vmatprep.subr.bf16.mxu0 0
    %1412 = vmatpush2.bf16.msra.mxu0 0
    %1413 = vmatprep.subr.bf16.mxu0 0
    %1414 = vmatpush2.bf16.msra.mxu0 0
    %1415 = vmatprep.subr.bf16.mxu0 0
    %1416 = vmatpush2.bf16.msra.mxu0 0
    %1417 = vmatprep.subr.bf16.mxu0 0
    %1418 = vmatpush2.bf16.msra.mxu0 0
    %1419 = vmatprep.mubr.bf16.mxu0 0
    %1420 = vmatmul.mubr.bf16.gmra.mxu0 %v1337
    %v1421 = vpop.f32.mrf.mxu0
    %v1422 = vadd.f32 %v1338, %v1421
    %v1423 = vpop.f32.mrf.mxu0
    %v1424 = vpop.f32.mrf.mxu0
    %v1425 = vpop.f32.mrf.mxu0
    %1426 = vdwg.mxu0
    %vm1427 = vcmask 25600
    %1428 = vst.msk [vmem:[#allocation7] sm:$0x3] %vm1427, %v1422
    // Predicated region
    $region34: #{fwd.1} parent=1 // pred_check
      _
    $region35: #{fwd.1} parent=1 // pred_check_branch
      %1430 = sbr.rel (0) target = $region37
    $region36: #{fwd.1} parent=1 // pred_region
      %s1432 = ssub.s32 32, 32
      %1433 = vsyncadd [#allocation4], %s1432
      %s1435 = sshll.u32 [#allocation7], 4
      %s1436 = int_to_ptr.vmem [resolvable:$true] %s1435
      %1438 = dma.vmem_to_hbm [thread:$0]  %s1436, 32, %s6, [#allocation4]
    $region37: #{fwd.1} parent=1 // pred_fallthru
      _
    // Predicated region
    $region38: #{fwd.1} parent=1 // pred_check
      _
    $region39: #{fwd.1} parent=1 // pred_check_branch
      %1440 = sbr.rel (0) target = $region41
    $region40: #{fwd.1} parent=1 // pred_region
      %1441 = dma.done [#allocation4], 32
    $region41: #{fwd.1} parent=1 // pred_fallthru
      _
    %1442 = vsyncpa [#allocation3], 1
    %1443 = vsyncpa [#allocation6], 1
    %1444 = vsyncpa [#allocation4], 1

</llo_original>
